<compile_context>
chip_gen: v6e
topology: v6e:2x2x1
jax: 0.10.0
libtpu: 0.0.40
codegen_flags: <defaults>
</compile_context>

<pallas_src>
import jax
import jax.numpy as jnp
from jax.experimental import pallas as pl
from jax.experimental.pallas import tpu as pltpu

EPS = 1e-5
LANE = 128


def _round_up(x, m):
    return (x + m - 1) // m * m


def _tpu_vmem_bytes():
    try:
        return int(pltpu.get_tpu_info().vmem_capacity_bytes)
    except Exception:
        return 64 * 1024 * 1024          # conservative default (v7x per-TC)


_VMEM_CAP = _tpu_vmem_bytes()
# ~25% headroom below physical VMEM for compiler-internal scratch.
VMEM_LIMIT = min(_VMEM_CAP * 3 // 4, 96 * 1024 * 1024)
# Row-tile target per generation: 512 on 64 MiB VMEM (v7x), 1024 on 128 MiB.
_TM_TARGET = 512 if _VMEM_CAP <= 64 * 1024 * 1024 else 1024
# Weights kept fully VMEM-resident (single K block, constant index_map) when
# they fit this budget; largest standard BasicBlock case is ~4.7 MiB bf16.
_FULLK_W_BYTES = 16 * 1024 * 1024


def _m_tile(m):
    # Keep >= 2 row tiles (v7x has 2 TensorCores) whenever m allows it.
    if m >= 2 * _TM_TARGET:
        tm = _TM_TARGET
    elif m >= 16:
        tm = _round_up((m + 1) // 2, 8)
    else:
        tm = _round_up(max(m, 8), 8)
    return tm, _round_up(m, tm)


def _k_tile(k, cp):
    kp = _round_up(k, LANE)
    if kp * cp * 2 <= _FULLK_W_BYTES:    # full-K: weights resident in VMEM
        return kp, kp
    tk = 512                             # fallback: bounded per-stream VMEM
    return tk, _round_up(k, tk)


def _cparams(semantics):
    return pltpu.CompilerParams(dimension_semantics=semantics,
                                vmem_limit_bytes=VMEM_LIMIT)


# ----------------------------- Pallas kernels ------------------------------

def _conv1_fullk_kernel(p_ref, w_ref, b_ref, h_ref):
    """conv1 GEMM (full K) + folded-BN bias + ReLU."""
    acc = jnp.dot(p_ref[...], w_ref[...], preferred_element_type=jnp.float32)
    h_ref[...] = jnp.maximum(acc + b_ref[...], 0.0).astype(h_ref.dtype)


def _make_conv1_proj_fullk_kernel(center, cin):
    """conv1 GEMM + bias + ReLU, fused 1x1 projection from the center tap."""
    def kernel(p_ref, w_ref, b_ref, wsc_ref, bsc_ref, h_ref, sc_ref):
        acc = jnp.dot(p_ref[...], w_ref[...],
                      preferred_element_type=jnp.float32)
        h_ref[...] = jnp.maximum(acc + b_ref[...], 0.0).astype(h_ref.dtype)
        # center tap of 3x3/pad-1 patches == strided 1x1-conv input (no xs stream)
        xc = p_ref[:, center:center + cin]
        sc = jnp.dot(xc, wsc_ref[...], preferred_element_type=jnp.float32)
        sc_ref[...] = (sc + bsc_ref[...]).astype(sc_ref.dtype)
    return kernel


def _conv1_tiled_kernel(p_ref, w_ref, b_ref, h_ref, acc_ref):
    """K-tiled fallback for conv1 (only when weights don't fit VMEM)."""
    k = pl.program_id(1)

    @pl.when(k == 0)
    def _():
        acc_ref[...] = jnp.zeros_like(acc_ref)

    acc_ref[...] += jnp.dot(p_ref[...], w_ref[...],
                            preferred_element_type=jnp.float32)

    @pl.when(k == pl.num_programs(1) - 1)
    def _():
        h_ref[...] = jnp.maximum(acc_ref[...] + b_ref[...], 0.0
                                 ).astype(h_ref.dtype)


def _proj_kernel(xs_ref, wsc_ref, bsc_ref, sc_ref):
    """Standalone 1x1-conv + BN projection (fallback path only)."""
    sc = jnp.dot(xs_ref[...], wsc_ref[...], preferred_element_type=jnp.float32)
    sc_ref[...] = (sc + bsc_ref[...]).astype(sc_ref.dtype)


def _conv2_kernel(p_ref, w_ref, b_ref, r_ref, o_ref):
    """conv2 GEMM (accumulates into f32 output) + bias + residual + ReLU."""
    k = pl.program_id(1)

    @pl.when(k == 0)
    def _():
        o_ref[...] = jnp.zeros_like(o_ref)

    o_ref[...] += jnp.dot(p_ref[...], w_ref[...],
                          preferred_element_type=jnp.float32)

    @pl.when(k == pl.num_programs(1) - 1)
    def _():
        o_ref[...] = jnp.maximum(
            o_ref[...] + b_ref[...] + r_ref[...].astype(jnp.float32), 0.0)


# ------------------------------ pallas_call wrappers ------------------------

def conv1_bn_relu_fullk(p, w, b, *, tm):
    mp, kp = p.shape
    cp = w.shape[1]
    return pl.pallas_call(
        _conv1_fullk_kernel,
        out_shape=jax.ShapeDtypeStruct((mp, cp), jnp.bfloat16),
        grid_spec=pltpu.PrefetchScalarGridSpec(
            num_scalar_prefetch=0, grid=(mp // tm,),
            in_specs=[
                pl.BlockSpec((tm, kp), lambda i: (i, 0)),
                pl.BlockSpec((kp, cp), lambda i: (0, 0)),   # VMEM-resident
                pl.BlockSpec((1, cp), lambda i: (0, 0)),
            ],
            out_specs=pl.BlockSpec((tm, cp), lambda i: (i, 0))),
        compiler_params=_cparams(("parallel",)),
    )(p, w, b)


def conv1_bn_relu_proj_fullk(p, w, b, wsc, bsc, *, tm, cin, center):
    mp, kp = p.shape
    cp = w.shape[1]
    kernel = _make_conv1_proj_fullk_kernel(center, cin)
    return pl.pallas_call(
        kernel,
        out_shape=(jax.ShapeDtypeStruct((mp, cp), jnp.bfloat16),
                   jax.ShapeDtypeStruct((mp, cp), jnp.bfloat16)),
        grid_spec=pltpu.PrefetchScalarGridSpec(
            num_scalar_prefetch=0, grid=(mp // tm,),
            in_specs=[
                pl.BlockSpec((tm, kp), lambda i: (i, 0)),
                pl.BlockSpec((kp, cp), lambda i: (0, 0)),    # VMEM-resident
                pl.BlockSpec((1, cp), lambda i: (0, 0)),
                pl.BlockSpec((cin, cp), lambda i: (0, 0)),   # VMEM-resident
                pl.BlockSpec((1, cp), lambda i: (0, 0)),
            ],
            out_specs=(pl.BlockSpec((tm, cp), lambda i: (i, 0)),
                       pl.BlockSpec((tm, cp), lambda i: (i, 0)))),
        compiler_params=_cparams(("parallel",)),
    )(p, w, b, wsc, bsc)


def conv1_bn_relu_tiled(p, w, b, *, tm, tk):
    mp, kp = p.shape
    cp = w.shape[1]
    return pl.pallas_call(
        _conv1_tiled_kernel,
        out_shape=jax.ShapeDtypeStruct((mp, cp), jnp.bfloat16),
        grid_spec=pltpu.PrefetchScalarGridSpec(
            num_scalar_prefetch=0, grid=(mp // tm, kp // tk),
            in_specs=[
                pl.BlockSpec((tm, tk), lambda i, k: (i, k)),
                pl.BlockSpec((tk, cp), lambda i, k: (k, 0)),
                pl.BlockSpec((1, cp), lambda i, k: (0, 0)),
            ],
            out_specs=pl.BlockSpec((tm, cp), lambda i, k: (i, 0)),
            scratch_shapes=[pltpu.VMEM((tm, cp), jnp.float32)]),
        compiler_params=_cparams(("parallel", "arbitrary")),
    )(p, w, b)


def proj_bn(xs, wsc, bsc, *, tm):
    mp, cin = xs.shape
    cp = wsc.shape[1]
    return pl.pallas_call(
        _proj_kernel,
        out_shape=jax.ShapeDtypeStruct((mp, cp), jnp.bfloat16),
        grid_spec=pltpu.PrefetchScalarGridSpec(
            num_scalar_prefetch=0, grid=(mp // tm,),
            in_specs=[
                pl.BlockSpec((tm, cin), lambda i: (i, 0)),
                pl.BlockSpec((cin, cp), lambda i: (0, 0)),
                pl.BlockSpec((1, cp), lambda i: (0, 0)),
            ],
            out_specs=pl.BlockSpec((tm, cp), lambda i: (i, 0))),
        compiler_params=_cparams(("parallel",)),
    )(xs, wsc, bsc)


def conv2_bn_add_relu(p, w, b, r, *, tm, tk):
    mp, kp = p.shape
    cp = w.shape[1]
    return pl.pallas_call(
        _conv2_kernel,
        out_shape=jax.ShapeDtypeStruct((mp, cp), jnp.float32),
        grid_spec=pltpu.PrefetchScalarGridSpec(
            num_scalar_prefetch=0, grid=(mp // tm, kp // tk),
            in_specs=[
                pl.BlockSpec((tm, tk), lambda i, k: (i, k)),
                pl.BlockSpec((tk, cp), lambda i, k: (k, 0)),
                pl.BlockSpec((1, cp), lambda i, k: (0, 0)),
                pl.BlockSpec((tm, cp), lambda i, k: (i, 0)),   # bf16 residual
            ],
            out_specs=pl.BlockSpec((tm, cp), lambda i, k: (i, 0))),
        compiler_params=_cparams(("parallel", "arbitrary")),
    )(p, w, b, r)


# ------------------------------- JAX glue -----------------------------------

def im2col(x_nhwc, ksize, stride, pad):
    n, h, w, c = x_nhwc.shape
    xp = jnp.pad(x_nhwc, ((0, 0), (pad, pad), (pad, pad), (0, 0)))
    ho = (h + 2 * pad - ksize) // stride + 1
    wo = (w + 2 * pad - ksize) // stride + 1
    cols = []
    for kh in range(ksize):
        for kw in range(ksize):
            cols.append(xp[:, kh:kh + ho * stride:stride,
                           kw:kw + wo * stride:stride, :])
    patches = jnp.concatenate(cols, axis=-1)      # (N, Ho, Wo, 9*C), (kh,kw,c)
    return patches.reshape(n * ho * wo, ksize * ksize * c), (ho, wo)


def fold_bn(bn):
    s = bn["gamma"] / jnp.sqrt(bn["var"] + EPS)
    b = bn["beta"] - bn["mean"] * s
    return s.astype(jnp.float32), b.astype(jnp.float32)


def _pad2d(a, rows, cols):
    return jnp.pad(a, ((0, rows - a.shape[0]), (0, cols - a.shape[1])))


def basic_block_forward(x_nchw, params, stride=1):
    x = jnp.transpose(x_nchw, (0, 2, 3, 1)).astype(jnp.float32)   # NCHW -> NHWC
    n, h, w, cin = x.shape
    cout = params["conv1_w"].shape[0]
    cp = _round_up(cout, LANE)                                    # lane-dense

    # ---- conv1 (+ fused projection shortcut) --------------------------------
    s1, b1 = fold_bn(params["bn1"])
    # OIHW -> (kh, kw, cin, cout); fold BN scale into output channels.
    w1 = (jnp.transpose(params["conv1_w"], (2, 3, 1, 0)) * s1).reshape(9 * cin, cout)
    b1p = _pad2d(b1.reshape(1, cout), 1, cp)

    p1, (ho, wo) = im2col(x.astype(jnp.bfloat16), 3, stride, 1)
    m = n * ho * wo
    k1 = 9 * cin
    tm, mp = _m_tile(m)
    tk1, k1p = _k_tile(k1, cp)
    full1 = tk1 == k1p
    p1 = _pad2d(p1, mp, k1p)
    w1p = _pad2d(w1, k1p, cp).astype(jnp.bfloat16)

    has_proj = "sc_w" in params
    if has_proj:
        ssc, bsc = fold_bn(params["bn_sc"])
        wsc = params["sc_w"][:, :, 0, 0].T * ssc                  # (cin, cout)
        wscp = _pad2d(wsc, cin, cp).astype(jnp.bfloat16)
        bscp = _pad2d(bsc.reshape(1, cout), 1, cp)

    if has_proj and full1:
        # 1x1-conv input == center tap (kh=kw=1) of the 3x3/pad-1 patches,
        # i.e. columns [4*cin, 5*cin) of p1 -> sliced in-kernel, no xs stream.
        h1, res = conv1_bn_relu_proj_fullk(p1, w1p, b1p, wscp, bscp,
                                           tm=tm, cin=cin, center=4 * cin)
    else:
        if full1:
            h1 = conv1_bn_relu_fullk(p1, w1p, b1p, tm=tm)
        else:
            h1 = conv1_bn_relu_tiled(p1, w1p, b1p, tm=tm, tk=tk1)
        if has_proj:
            xs = x[:, ::stride, ::stride, :].reshape(m, cin)
            xsp = _pad2d(xs, mp, cin).astype(jnp.bfloat16)
            res = proj_bn(xsp, wscp, bscp, tm=tm)
        else:
            # identity shortcut (stride == 1, cin == cout), bf16 residual
            res = _pad2d(x.reshape(m, cin), mp, cp).astype(jnp.bfloat16)

    # ---- conv2 + BN2 + residual add + ReLU ----------------------------------
    s2, b2 = fold_bn(params["bn2"])
    w2 = jnp.transpose(params["conv2_w"], (2, 3, 1, 0)) * s2      # (3,3,cout,cout)
    # pad input-channel axis to cp (h1 lanes are zero-padded), then flatten
    w2 = jnp.pad(w2, ((0, 0), (0, 0), (0, cp - cout), (0, 0))).reshape(9 * cp, cout)
    b2p = _pad2d(b2.reshape(1, cout), 1, cp)

    h1_nhwc = h1[:m].reshape(n, ho, wo, cp)                       # bf16, padded lanes
    p2, _ = im2col(h1_nhwc, 3, 1, 1)                              # (m, 9*cp) bf16
    k2 = 9 * cp
    tk2, k2p = _k_tile(k2, cp)
    p2 = _pad2d(p2, mp, k2p)
    w2p = _pad2d(w2, k2p, cp).astype(jnp.bfloat16)

    out = conv2_bn_add_relu(p2, w2p, b2p, res, tm=tm, tk=tk2)     # (mp, cp) f32
    out = out[:m, :cout].reshape(n, ho, wo, cout)
    return jnp.transpose(out, (0, 3, 1, 2))                       # NHWC -> NCHW


# ------------------------- pure-JAX reference (for check) -------------------

def ref_forward(x, params, stride):
    def conv(xx, w, s, p):
        return jax.lax.conv_general_dilated(
            xx, w, window_strides=(s, s), padding=((p, p), (p, p)),
            dimension_numbers=("NCHW", "OIHW", "NCHW"),
            precision=jax.lax.Precision.HIGHEST)

    def bn(xx, pr):
        inv = pr["gamma"] / jnp.sqrt(pr["var"] + EPS)
        return xx * inv[None, :, None, None] + \
            (pr["beta"] - pr["mean"] * inv)[None, :, None, None]

    out = jax.nn.relu(bn(conv(x, params["conv1_w"], stride, 1), params["bn1"]))
    out = bn(conv(out, params["conv2_w"], 1, 1), params["bn2"])
    if "sc_w" in params:
        sc = bn(conv(x, params["sc_w"], stride, 0), params["bn_sc"])
    else:
        sc = x
    return jax.nn.relu(out + sc)


# ------------------------------- params init --------------------------------

def init_params(key, cin, cout, stride):
    ks = jax.random.split(key, 6)

    def bn_params(k):
        k1, k2, k3, k4 = jax.random.split(k, 4)
        return {
            "gamma": 1.0 + 0.1 * jax.random.normal(k1, (cout,), jnp.float32),
            "beta": 0.1 * jax.random.normal(k2, (cout,), jnp.float32),
            "mean": 0.05 * jax.random.normal(k3, (cout,), jnp.float32),
            "var": 0.9 + 0.2 * jax.random.uniform(k4, (cout,), jnp.float32),
        }

    params = {
        "conv1_w": 0.2 * jax.random.normal(ks[0], (cout, cin, 3, 3), jnp.float32),
        "bn1": bn_params(ks[1]),
        "conv2_w": 0.2 * jax.random.normal(ks[2], (cout, cout, 3, 3), jnp.float32),
        "bn2": bn_params(ks[3]),
    }
    if stride != 1 or cin != cout:
        params["sc_w"] = 0.2 * jax.random.normal(ks[4], (cout, cin, 1, 1), jnp.float32)
        params["bn_sc"] = bn_params(ks[5])
    return params


# ---------------------------------- main -------------------------------------

if __name__ == "__main__":
    key = jax.random.PRNGKey(0)
    kx, kp = jax.random.split(key)

    N, Cin, H, W = 2, 4, 16, 16
    Cout, stride = 8, 1          # in != out -> exercises projection shortcut

    x = jax.random.normal(kx, (N, Cin, H, W), dtype=jnp.float32)
    params = init_params(kp, Cin, Cout, stride)

    out = basic_block_forward(x, params, stride=stride)
    out = jax.block_until_ready(out)

    ref = ref_forward(x, params, stride)
    assert out.shape == ref.shape, (out.shape, ref.shape)
    max_err = float(jnp.max(jnp.abs(out - ref)))
    # bf16 MXU operands / bf16 residual with f32 accumulation -> loose tolerance.
    assert bool(jnp.allclose(out, ref, atol=5e-2, rtol=5e-2)), \
        f"max abs err {max_err}"

    print("KERNEL_OK")
</pallas_src>

<mosaic_0001>
module attributes {stable_mosaic.version = 11 : i64} {
  func.func @kernel(%arg0: i32, %arg1: memref<256x128xbf16, #tpu.memory_space<vmem>>, %arg2: memref<128x128xbf16, #tpu.memory_space<vmem>>, %arg3: memref<1x128xf32, #tpu.memory_space<vmem>>, %arg4: memref<4x128xbf16, #tpu.memory_space<vmem>>, %arg5: memref<1x128xf32, #tpu.memory_space<vmem>>, %arg6: memref<256x128xbf16, #tpu.memory_space<vmem>>, %arg7: memref<256x128xbf16, #tpu.memory_space<vmem>>) attributes {dimension_semantics = [#tpu.dimension_semantics<parallel>], iteration_bounds = array<i64: 2>, scalar_prefetch = 0 : i64, scratch_operands = 0 : i64, tpu.core_type = #tpu.core_type<tc>, window_params = [{transform_indices = @transform_0, window_bounds = array<i64: 256, 128>}, {pipeline_mode = #tpu.pipeline_mode<synchronous>, transform_indices = @transform_1, window_bounds = array<i64: 128, 128>}, {pipeline_mode = #tpu.pipeline_mode<synchronous>, transform_indices = @transform_2, window_bounds = array<i64: 1, 128>}, {pipeline_mode = #tpu.pipeline_mode<synchronous>, transform_indices = @transform_3, window_bounds = array<i64: 4, 128>}, {pipeline_mode = #tpu.pipeline_mode<synchronous>, transform_indices = @transform_4, window_bounds = array<i64: 1, 128>}, {transform_indices = @transform_5, window_bounds = array<i64: 256, 128>}, {transform_indices = @transform_6, window_bounds = array<i64: 256, 128>}]} {
    %c0 = arith.constant 0 : index
    %c0_0 = arith.constant 0 : index
    %0 = vector.load %arg1[%c0, %c0_0] : memref<256x128xbf16, #tpu.memory_space<vmem>>, vector<256x128xbf16>
    %c0_1 = arith.constant 0 : index
    %c0_2 = arith.constant 0 : index
    %1 = vector.load %arg2[%c0_1, %c0_2] : memref<128x128xbf16, #tpu.memory_space<vmem>>, vector<128x128xbf16>
    %cst = arith.constant dense<0.000000e+00> : vector<256x128xf32>
    %2 = tpu.matmul %0, %1, %cst {dimension_numbers = #tpu.dot_dimension_numbers<[1], [0], [0], [1], [0, 0, 1, 1], [], []>} : vector<256x128xbf16>, vector<128x128xbf16>, vector<256x128xf32> -> vector<256x128xf32>
    %c0_3 = arith.constant 0 : index
    %c0_4 = arith.constant 0 : index
    %3 = vector.load %arg3[%c0_3, %c0_4] : memref<1x128xf32, #tpu.memory_space<vmem>>, vector<1x128xf32>
    %4 = vector.broadcast %3 : vector<1x128xf32> to vector<256x128xf32>
    %5 = arith.addf %2, %4 : vector<256x128xf32>
    %cst_5 = arith.constant 0.000000e+00 : f32
    %6 = vector.broadcast %cst_5 : f32 to vector<256x128xf32>
    %7 = arith.maximumf %5, %6 : vector<256x128xf32>
    %8 = arith.truncf %7 : vector<256x128xf32> to vector<256x128xbf16>
    %c0_6 = arith.constant 0 : index
    %c0_7 = arith.constant 0 : index
    %9 = vector.load %arg6[%c0_6, %c0_7] : memref<256x128xbf16, #tpu.memory_space<vmem>>, vector<256x128xbf16>
    tpu.vector_store %arg6[%c0_6, %c0_7], %8 {strides = array<i32>} : memref<256x128xbf16, #tpu.memory_space<vmem>>, vector<256x128xbf16>,
    %c0_8 = arith.constant 0 : index
    %c16 = arith.constant 16 : index
    %10 = vector.load %arg1[%c0_8, %c16] : memref<256x128xbf16, #tpu.memory_space<vmem>>, vector<256x4xbf16>
    %c0_9 = arith.constant 0 : index
    %c0_10 = arith.constant 0 : index
    %11 = vector.load %arg4[%c0_9, %c0_10] : memref<4x128xbf16, #tpu.memory_space<vmem>>, vector<4x128xbf16>
    %cst_11 = arith.constant dense<0.000000e+00> : vector<256x128xf32>
    %12 = tpu.matmul %10, %11, %cst_11 {dimension_numbers = #tpu.dot_dimension_numbers<[1], [0], [0], [1], [0, 0, 1, 1], [], []>} : vector<256x4xbf16>, vector<4x128xbf16>, vector<256x128xf32> -> vector<256x128xf32>
    %c0_12 = arith.constant 0 : index
    %c0_13 = arith.constant 0 : index
    %13 = vector.load %arg5[%c0_12, %c0_13] : memref<1x128xf32, #tpu.memory_space<vmem>>, vector<1x128xf32>
    %14 = vector.broadcast %13 : vector<1x128xf32> to vector<256x128xf32>
    %15 = arith.addf %12, %14 : vector<256x128xf32>
    %16 = arith.truncf %15 : vector<256x128xf32> to vector<256x128xbf16>
    %c0_14 = arith.constant 0 : index
    %c0_15 = arith.constant 0 : index
    %17 = vector.load %arg7[%c0_14, %c0_15] : memref<256x128xbf16, #tpu.memory_space<vmem>>, vector<256x128xbf16>
    tpu.vector_store %arg7[%c0_14, %c0_15], %16 {strides = array<i32>} : memref<256x128xbf16, #tpu.memory_space<vmem>>, vector<256x128xbf16>,
    return
  }
  func.func @transform_0(%arg0: i32) -> (i32, i32) {
    %c0_i32 = arith.constant 0 : i32
    %c0_i32_0 = arith.constant 0 : i32
    return %arg0, %c0_i32 : i32, i32
  }
  func.func @transform_1(%arg0: i32) -> (i32, i32) {
    %c0_i32 = arith.constant 0 : i32
    %c0_i32_0 = arith.constant 0 : i32
    %c0_i32_1 = arith.constant 0 : i32
    return %c0_i32, %c0_i32_0 : i32, i32
  }
  func.func @transform_2(%arg0: i32) -> (i32, i32) {
    %c0_i32 = arith.constant 0 : i32
    %c0_i32_0 = arith.constant 0 : i32
    %c0_i32_1 = arith.constant 0 : i32
    return %c0_i32, %c0_i32_0 : i32, i32
  }
  func.func @transform_3(%arg0: i32) -> (i32, i32) {
    %c0_i32 = arith.constant 0 : i32
    %c0_i32_0 = arith.constant 0 : i32
    %c0_i32_1 = arith.constant 0 : i32
    return %c0_i32, %c0_i32_0 : i32, i32
  }
  func.func @transform_4(%arg0: i32) -> (i32, i32) {
    %c0_i32 = arith.constant 0 : i32
    %c0_i32_0 = arith.constant 0 : i32
    %c0_i32_1 = arith.constant 0 : i32
    return %c0_i32, %c0_i32_0 : i32, i32
  }
  func.func @transform_5(%arg0: i32) -> (i32, i32) {
    %c0_i32 = arith.constant 0 : i32
    %c0_i32_0 = arith.constant 0 : i32
    return %arg0, %c0_i32 : i32, i32
  }
  func.func @transform_6(%arg0: i32) -> (i32, i32) {
    %c0_i32 = arith.constant 0 : i32
    %c0_i32_0 = arith.constant 0 : i32
    return %arg0, %c0_i32 : i32, i32
  }
}

</mosaic_0001>

<llo_original>
// kernel: tpu_custom_call.1
$region0: #{tpu_custom_call.1}
  #allocation0 [shape = 'u32[]', space=smem, size = 0x4, offset = 0x4, fixed_abs, tag = 'smem constant byte address 0x4 - core index']
  #allocation1 [shape = 'u32[144,128]{1,0:T(1,128)}', space=vmem, size = 0x12000, scoped, tag = 'internal scratch']
  %s0 = inlined_call_operand.hbm [shape: bf16[512,128], index: 0, kind: input, shape index: {}]
  %s1 = inlined_call_operand.hbm [shape: bf16[128,128], index: 1, kind: input, shape index: {}]
  %s2 = inlined_call_operand.vmem [shape: f32[1,128], index: 2, kind: input, shape index: {}]
  %s3 = inlined_call_operand.vmem [shape: bf16[4,128], index: 3, kind: input, shape index: {}]
  %s4 = inlined_call_operand.vmem [shape: f32[1,128], index: 4, kind: input, shape index: {}]
  %s5 = inlined_call_operand.hbm [shape: bf16[512,128], index: 5, kind: output, shape index: {0}]
  %s6 = inlined_call_operand.hbm [shape: bf16[512,128], index: 6, kind: output, shape index: {1}]
  %7 = xla_tuple %s5, %s6
  %s8 = sld [smem:[#allocation0]]
  $region69: #{tpu_custom_call.1} parent=0
    _
  %s10 = ssub.s32 1, %s8
  %s11 = scalar_select 0, %s10, %s8
  $region1: #{tpu_custom_call.1} parent=0
    #allocation2 [shape = 'u8[131072]{0}', space=vmem, size = 0x20000, scoped, tag = 'input window, operand 0']
    #allocation3 [shape = 's32[2]{0}', space=sflag, size = 0x8, scoped, tag = 'scoped memory for tpu_custom_call.1']
    #allocation4 [shape = 's32[2]{0}', space=sflag, size = 0x8, scoped, tag = 'scoped memory for tpu_custom_call.1']
    #allocation5 [shape = 'u8[32768]{0}', space=vmem, size = 0x8000, scoped, tag = 'input window, operand 1, single buffered']
    #allocation6 [shape = 's32[1]{0}', space=sflag, size = 0x4, scoped, tag = 'scoped memory for tpu_custom_call.1']
    #allocation7 [shape = 'u8[131072]{0}', space=vmem, size = 0x20000, scoped, tag = 'output window, operand 0']
    #allocation8 [shape = 'u8[131072]{0}', space=vmem, size = 0x20000, scoped, tag = 'output window, operand 1']
    #allocation9 [shape = 's32[2]{0}', space=sflag, size = 0x8, scoped, tag = 'scoped memory for tpu_custom_call.1']
    %12 = vsyncpa [#allocation3], 0
    %s13 = scalar_lea.sflag [#allocation3], 1
    %14 = vsyncpa %s13, 0
    %15 = vsyncpa [#allocation6], 0
    %16 = vsyncpa [#allocation4], 0
    %s17 = scalar_lea.sflag [#allocation4], 1
    %18 = vsyncpa %s17, 0
    %19 = vsyncpa [#allocation9], 0
    %s20 = scalar_lea.sflag [#allocation9], 1
    %21 = vsyncpa %s20, 0
    loop: start=0, step=1, limit=4
    $region2: #{tpu_custom_call.1} parent=1 // loop_pre_header
      _
    $region3: #{tpu_custom_call.1} parent=1 // loop_header
      %s23 = sphi 0, %s27
      %p24 = scmp.ge.s32.totalorder %s23, 4
      %s33 = sphi 0, %s35
      %s36 = sphi 0, %s33
      %s37 = sphi 0, %s36
      %s53 = sphi 0, %s37
      %s57 = sphi 0, %s57
      %s59 = sphi 0, %s57
      %s60 = sphi 0, %s59
      %s74 = sphi 0, %s60
      %s78 = sphi 0, %s78
      %s80 = sphi 0, %s78
      %s81 = sphi 0, %s80
      %s95 = sphi 0, %s81
      %s99 = sphi 0, %s99
      %s101 = sphi 0, %s99
      %s102 = sphi 0, %s101
      %s116 = sphi 0, %s102
      %s120 = sphi 0, %s120
      %s122 = sphi 0, %s120
      %s123 = sphi 0, %s122
      %s137 = sphi 0, %s123
      %s143 = sphi 0, %s145
      %s146 = sphi 0, %s143
      %s147 = sphi 0, %s146
      %s163 = sphi 0, %s147
      %s169 = sphi 0, %s171
      %s172 = sphi 0, %s169
      %s173 = sphi 0, %s172
      %s189 = sphi 0, %s173
    $region4: #{tpu_custom_call.1} parent=1 // loop_header_branch
      %26 = sbr.rel (%p24) target = $region8
    $region5: #{tpu_custom_call.1} parent=1 // loop_body
      %s28 = ssub.s32 %s23, 1
      %s29 = ssub.s32 %s23, 2
      %s30 = sadd.s32 %s23, 1
      %s31 = ssub.s32 %s23, %s30
      %p32 = scmp.eq.s32.totalorder %s31, 0
      %s34 = sadd.s32 %s33, 1
      %s35 = scalar_select %p32, %s33, %s34
      %p38 = pneg %p32
      %p39 = scmp.eq.s32.totalorder %s23, 1
      %p40 = por %p38, %p39
      %p41 = scmp.ne.s32.totalorder %s33, %s36
      %p42 = scmp.eq.s32.totalorder %s23, 0
      %p43 = por %p41, %p42
      %p44 = scmp.ne.s32.totalorder %s33, %s36
      %p45 = scmp.eq.s32.totalorder %s28, 1
      %p46 = por %p44, %p45
      %p47 = scmp.ne.s32.totalorder %s36, %s37
      %p48 = scmp.eq.s32.totalorder %s28, 0
      %p49 = por %p47, %p48
      %p50 = scmp.ne.s32.totalorder %s36, %s37
      %p51 = scmp.eq.s32.totalorder %s29, 1
      %p52 = por %p50, %p51
      %p54 = scmp.ne.s32.totalorder %s37, %s53
      %p55 = scmp.eq.s32.totalorder %s29, 0
      %p56 = por %p54, %p55
      %s58 = sadd.s32 %s57, 1
      %p61 = scmp.eq.s32.totalorder %s23, 1
      %p62 = scmp.ne.s32.totalorder %s57, %s59
      %p63 = scmp.eq.s32.totalorder %s23, 0
      %p64 = por %p62, %p63
      %p65 = scmp.ne.s32.totalorder %s57, %s59
      %p66 = scmp.eq.s32.totalorder %s28, 1
      %p67 = por %p65, %p66
      %p68 = scmp.ne.s32.totalorder %s59, %s60
      %p69 = scmp.eq.s32.totalorder %s28, 0
      %p70 = por %p68, %p69
      %p71 = scmp.ne.s32.totalorder %s59, %s60
      %p72 = scmp.eq.s32.totalorder %s29, 1
      %p73 = por %p71, %p72
      %p75 = scmp.ne.s32.totalorder %s60, %s74
      %p76 = scmp.eq.s32.totalorder %s29, 0
      %p77 = por %p75, %p76
      %s79 = sadd.s32 %s78, 1
      %p82 = scmp.eq.s32.totalorder %s23, 1
      %p83 = scmp.ne.s32.totalorder %s78, %s80
      %p84 = scmp.eq.s32.totalorder %s23, 0
      %p85 = por %p83, %p84
      %p86 = scmp.ne.s32.totalorder %s78, %s80
      %p87 = scmp.eq.s32.totalorder %s28, 1
      %p88 = por %p86, %p87
      %p89 = scmp.ne.s32.totalorder %s80, %s81
      %p90 = scmp.eq.s32.totalorder %s28, 0
      %p91 = por %p89, %p90
      %p92 = scmp.ne.s32.totalorder %s80, %s81
      %p93 = scmp.eq.s32.totalorder %s29, 1
      %p94 = por %p92, %p93
      %p96 = scmp.ne.s32.totalorder %s81, %s95
      %p97 = scmp.eq.s32.totalorder %s29, 0
      %p98 = por %p96, %p97
      %s100 = sadd.s32 %s99, 1
      %p103 = scmp.eq.s32.totalorder %s23, 1
      %p104 = scmp.ne.s32.totalorder %s99, %s101
      %p105 = scmp.eq.s32.totalorder %s23, 0
      %p106 = por %p104, %p105
      %p107 = scmp.ne.s32.totalorder %s99, %s101
      %p108 = scmp.eq.s32.totalorder %s28, 1
      %p109 = por %p107, %p108
      %p110 = scmp.ne.s32.totalorder %s101, %s102
      %p111 = scmp.eq.s32.totalorder %s28, 0
      %p112 = por %p110, %p111
      %p113 = scmp.ne.s32.totalorder %s101, %s102
      %p114 = scmp.eq.s32.totalorder %s29, 1
      %p115 = por %p113, %p114
      %p117 = scmp.ne.s32.totalorder %s102, %s116
      %p118 = scmp.eq.s32.totalorder %s29, 0
      %p119 = por %p117, %p118
      %s121 = sadd.s32 %s120, 1
      %p124 = scmp.eq.s32.totalorder %s23, 1
      %p125 = scmp.ne.s32.totalorder %s120, %s122
      %p126 = scmp.eq.s32.totalorder %s23, 0
      %p127 = por %p125, %p126
      %p128 = scmp.ne.s32.totalorder %s120, %s122
      %p129 = scmp.eq.s32.totalorder %s28, 1
      %p130 = por %p128, %p129
      %p131 = scmp.ne.s32.totalorder %s122, %s123
      %p132 = scmp.eq.s32.totalorder %s28, 0
      %p133 = por %p131, %p132
      %p134 = scmp.ne.s32.totalorder %s122, %s123
      %p135 = scmp.eq.s32.totalorder %s29, 1
      %p136 = por %p134, %p135
      %p138 = scmp.ne.s32.totalorder %s123, %s137
      %p139 = scmp.eq.s32.totalorder %s29, 0
      %p140 = por %p138, %p139
      %s141 = ssub.s32 %s23, %s30
      %p142 = scmp.eq.s32.totalorder %s141, 0
      %s144 = sadd.s32 %s143, 1
      %s145 = scalar_select %p142, %s143, %s144
      %p148 = pneg %p142
      %p149 = scmp.eq.s32.totalorder %s23, 1
      %p150 = por %p148, %p149
      %p151 = scmp.ne.s32.totalorder %s143, %s146
      %p152 = scmp.eq.s32.totalorder %s23, 0
      %p153 = por %p151, %p152
      %p154 = scmp.ne.s32.totalorder %s143, %s146
      %p155 = scmp.eq.s32.totalorder %s28, 1
      %p156 = por %p154, %p155
      %p157 = scmp.ne.s32.totalorder %s146, %s147
      %p158 = scmp.eq.s32.totalorder %s28, 0
      %p159 = por %p157, %p158
      %p160 = scmp.ne.s32.totalorder %s146, %s147
      %p161 = scmp.eq.s32.totalorder %s29, 1
      %p162 = por %p160, %p161
      %p164 = scmp.ne.s32.totalorder %s147, %s163
      %p165 = scmp.eq.s32.totalorder %s29, 0
      %p166 = por %p164, %p165
      %s167 = ssub.s32 %s23, %s30
      %p168 = scmp.eq.s32.totalorder %s167, 0
      %s170 = sadd.s32 %s169, 1
      %s171 = scalar_select %p168, %s169, %s170
      %p174 = pneg %p168
      %p175 = scmp.eq.s32.totalorder %s23, 1
      %p176 = por %p174, %p175
      %p177 = scmp.ne.s32.totalorder %s169, %s172
      %p178 = scmp.eq.s32.totalorder %s23, 0
      %p179 = por %p177, %p178
      %p180 = scmp.ne.s32.totalorder %s169, %s172
      %p181 = scmp.eq.s32.totalorder %s28, 1
      %p182 = por %p180, %p181
      %p183 = scmp.ne.s32.totalorder %s172, %s173
      %p184 = scmp.eq.s32.totalorder %s28, 0
      %p185 = por %p183, %p184
      %p186 = scmp.ne.s32.totalorder %s172, %s173
      %p187 = scmp.eq.s32.totalorder %s29, 1
      %p188 = por %p186, %p187
      %p190 = scmp.ne.s32.totalorder %s173, %s189
      %p191 = scmp.eq.s32.totalorder %s29, 0
      %p192 = por %p190, %p191
      %p193 = scmp.le.s32.totalorder 1, %s23
      %p194 = scmp.lt.s32.totalorder %s23, 3
      %p195 = pnand %p193, %p194
      %p196 = pneg %p195
      // Predicated region
      $region9: #{tpu_custom_call.1} parent=5 // pred_check
        _
      $region10: #{tpu_custom_call.1} parent=5 // pred_check_branch
        %198 = sbr.rel (%p195) target = $region12
      $region11: #{tpu_custom_call.1} parent=5 // pred_region
        %s199 = ssub.s32 %s23, 1
        // Predicated region
        $region13: #{tpu_custom_call.1} parent=11 // pred_check
          %p200 = pneg %p70
        $region14: #{tpu_custom_call.1} parent=11 // pred_check_branch
          %202 = sbr.rel (%p200) target = $region16
        $region15: #{tpu_custom_call.1} parent=11 // pred_region
          %s204 = ssub.s32 1024, 1024
          %205 = vsyncadd [#allocation6], %s204
          %s206 = sshll.u32 [#allocation5], 4
          %s207 = int_to_ptr.vmem [resolvable:$true] %s206
          %212 = dma.hbm_to_vmem [thread:$0]  %s1, 1024, %s207, [#allocation6], 64, 64, 4
        $region16: #{tpu_custom_call.1} parent=11 // pred_fallthru
          _
        // Predicated region
        $region17: #{tpu_custom_call.1} parent=11 // pred_check
          %p213 = pneg %p91
        $region18: #{tpu_custom_call.1} parent=11 // pred_check_branch
          %215 = sbr.rel (%p213) target = $region20
        $region19: #{tpu_custom_call.1} parent=11 // pred_region
          _
        $region20: #{tpu_custom_call.1} parent=11 // pred_fallthru
          _
        // Predicated region
        $region21: #{tpu_custom_call.1} parent=11 // pred_check
          %p216 = pneg %p112
        $region22: #{tpu_custom_call.1} parent=11 // pred_check_branch
          %218 = sbr.rel (%p216) target = $region24
        $region23: #{tpu_custom_call.1} parent=11 // pred_region
          _
        $region24: #{tpu_custom_call.1} parent=11 // pred_fallthru
          _
        // Predicated region
        $region25: #{tpu_custom_call.1} parent=11 // pred_check
          %p219 = pneg %p133
        $region26: #{tpu_custom_call.1} parent=11 // pred_check_branch
          %221 = sbr.rel (%p219) target = $region28
        $region27: #{tpu_custom_call.1} parent=11 // pred_region
          _
        $region28: #{tpu_custom_call.1} parent=11 // pred_fallthru
          _
      $region12: #{tpu_custom_call.1} parent=5 // pred_fallthru
        _
      %p222 = scmp.lt.s32.totalorder %s23, 2
      // Predicated region
      $region29: #{tpu_custom_call.1} parent=5 // pred_check
        %p223 = pneg %p222
      $region30: #{tpu_custom_call.1} parent=5 // pred_check_branch
        %225 = sbr.rel (%p223) target = $region32
      $region31: #{tpu_custom_call.1} parent=5 // pred_region
        // Predicated region
        $region33: #{tpu_custom_call.1} parent=31 // pred_check
          %p226 = pneg %p43
        $region34: #{tpu_custom_call.1} parent=31 // pred_check_branch
          %228 = sbr.rel (%p226) target = $region36
        $region35: #{tpu_custom_call.1} parent=31 // pred_region
          %s229 = sand.u32 %s33, 1
          %s230 = scalar_lea.sflag [#allocation3], %s229
          %s231 = sand.u32 %s33, 1
          %s232 = smul.addr %s231, 128
          %s233 = scalar_lea.vmem [#allocation2], %s232
          %s234 = smul.u32 32, %s23
          %s236 = ssub.s32 2048, 2048
          %237 = vsyncadd %s230, %s236
          %s238 = smul.addr %s234, 64
          %s239 = scalar_lea.hbm %s0, %s238
          %s240 = sshll.u32 %s233, 4
          %s241 = int_to_ptr.vmem [resolvable:$true] %s240
          %246 = dma.hbm_to_vmem [thread:$0]  %s239, 2048, %s241, %s230, 64, 64, 4
        $region36: #{tpu_custom_call.1} parent=31 // pred_fallthru
          _
      $region32: #{tpu_custom_call.1} parent=5 // pred_fallthru
        _
      %p247 = scmp.le.s32.totalorder 1, %s23
      %p248 = scmp.lt.s32.totalorder %s23, 3
      %p249 = pnand %p247, %p248
      %p250 = pneg %p249
      // Predicated region
      $region37: #{tpu_custom_call.1} parent=5 // pred_check
        _
      $region38: #{tpu_custom_call.1} parent=5 // pred_check_branch
        %252 = sbr.rel (%p249) target = $region40
      $region39: #{tpu_custom_call.1} parent=5 // pred_region
        %s253 = ssub.s32 %s23, 1
        %s254 = sand.u32 %s36, 1
        %s255 = scalar_lea.sflag [#allocation3], %s254
        %s256 = sand.u32 %s36, 1
        %s257 = smul.addr %s256, 128
        %s258 = scalar_lea.vmem [#allocation2], %s257
        // Predicated region
        $region41: #{tpu_custom_call.1} parent=39 // pred_check
          %p259 = pneg %p49
        $region42: #{tpu_custom_call.1} parent=39 // pred_check_branch
          %261 = sbr.rel (%p259) target = $region44
        $region43: #{tpu_custom_call.1} parent=39 // pred_region
          %262 = dma.done %s255, 2048
        $region44: #{tpu_custom_call.1} parent=39 // pred_fallthru
          _
        // Predicated region
        $region45: #{tpu_custom_call.1} parent=39 // pred_check
          %p263 = pneg %p70
        $region46: #{tpu_custom_call.1} parent=39 // pred_check_branch
          %265 = sbr.rel (%p263) target = $region48
        $region47: #{tpu_custom_call.1} parent=39 // pred_region
          %266 = dma.done [#allocation6], 1024
        $region48: #{tpu_custom_call.1} parent=39 // pred_fallthru
          _
        %s267 = sand.u32 %s36, 1
        %s268 = scalar_lea.sflag [#allocation3], %s267
        %s269 = sand.u32 %s36, 1
        %s270 = smul.addr %s269, 128
        %s271 = scalar_lea.vmem [#allocation2], %s270
        %p272 = pneg %p49
        %p273 = pneg %p46
        %p274 = pneg %p70
        %p275 = pneg %p67
        %p276 = pneg %p91
        %p277 = pneg %p88
        %p278 = pneg %p112
        %p279 = pneg %p109
        %p280 = pneg %p133
        %p281 = pneg %p130
        %p282 = pneg %p159
        %p283 = pneg %p156
        %s284 = sand.u32 %s146, 1
        %s285 = scalar_lea.sflag [#allocation4], %s284
        %s286 = sand.u32 %s146, 1
        %s287 = smul.addr %s286, 128
        %s288 = scalar_lea.vmem [#allocation7], %s287
        %p289 = pneg %p185
        %p290 = pneg %p182
        %s291 = sand.u32 %s172, 1
        %s292 = scalar_lea.sflag [#allocation9], %s291
        %s293 = sand.u32 %s172, 1
        %s294 = smul.addr %s293, 128
        %s295 = scalar_lea.vmem [#allocation8], %s294
        %s296 = smul.u32 32, %s28
        %s297 = smul.u32 32, %s28
        %s298 = smul.u32 32, %s28
        %v300 = vld [vmem:[%s258] sm:$0xf]
        %v301 = vld [vmem:[%s258 + $0x4] sm:$0xf]
        %v302 = vld [vmem:[%s258 + $0x8] sm:$0xf]
        %v303 = vld [vmem:[%s258 + $0xc] sm:$0xf]
        %v304 = vld [vmem:[%s258 + $0x10] sm:$0xf]
        %v305 = vld [vmem:[%s258 + $0x14] sm:$0xf]
        %v306 = vld [vmem:[%s258 + $0x18] sm:$0xf]
        %v307 = vld [vmem:[%s258 + $0x1c] sm:$0xf]
        %v308 = vld [vmem:[%s258 + $0x20] sm:$0xf]
        %v309 = vld [vmem:[%s258 + $0x24] sm:$0xf]
        %v310 = vld [vmem:[%s258 + $0x28] sm:$0xf]
        %v311 = vld [vmem:[%s258 + $0x2c] sm:$0xf]
        %v312 = vld [vmem:[%s258 + $0x30] sm:$0xf]
        %v313 = vld [vmem:[%s258 + $0x34] sm:$0xf]
        %v314 = vld [vmem:[%s258 + $0x38] sm:$0xf]
        %v315 = vld [vmem:[%s258 + $0x3c] sm:$0xf]
        %v316 = vld [vmem:[%s258 + $0x40] sm:$0xf]
        %v317 = vld [vmem:[%s258 + $0x44] sm:$0xf]
        %v318 = vld [vmem:[%s258 + $0x48] sm:$0xf]
        %v319 = vld [vmem:[%s258 + $0x4c] sm:$0xf]
        %v320 = vld [vmem:[%s258 + $0x50] sm:$0xf]
        %v321 = vld [vmem:[%s258 + $0x54] sm:$0xf]
        %v322 = vld [vmem:[%s258 + $0x58] sm:$0xf]
        %v323 = vld [vmem:[%s258 + $0x5c] sm:$0xf]
        %v324 = vld [vmem:[%s258 + $0x60] sm:$0xf]
        %v325 = vld [vmem:[%s258 + $0x64] sm:$0xf]
        %v326 = vld [vmem:[%s258 + $0x68] sm:$0xf]
        %v327 = vld [vmem:[%s258 + $0x6c] sm:$0xf]
        %v328 = vld [vmem:[%s258 + $0x70] sm:$0xf]
        %v329 = vld [vmem:[%s258 + $0x74] sm:$0xf]
        %v330 = vld [vmem:[%s258 + $0x78] sm:$0xf]
        %v331 = vld [vmem:[%s258 + $0x7c] sm:$0xf]
        %v332 = vld [vmem:[#allocation5] sm:$0xf]
        %v333 = vld [vmem:[#allocation5 + $0x4] sm:$0xf]
        %v334 = vld [vmem:[#allocation5 + $0x8] sm:$0xf]
        %v335 = vld [vmem:[#allocation5 + $0xc] sm:$0xf]
        %v336 = vld [vmem:[#allocation5 + $0x10] sm:$0xf]
        %v337 = vld [vmem:[#allocation5 + $0x14] sm:$0xf]
        %v338 = vld [vmem:[#allocation5 + $0x18] sm:$0xf]
        %v339 = vld [vmem:[#allocation5 + $0x1c] sm:$0xf]
        %v340 = vld [vmem:[#allocation5 + $0x20] sm:$0xf]
        %v341 = vld [vmem:[#allocation5 + $0x24] sm:$0xf]
        %v342 = vld [vmem:[#allocation5 + $0x28] sm:$0xf]
        %v343 = vld [vmem:[#allocation5 + $0x2c] sm:$0xf]
        %v344 = vld [vmem:[#allocation5 + $0x30] sm:$0xf]
        %v345 = vld [vmem:[#allocation5 + $0x34] sm:$0xf]
        %v346 = vld [vmem:[#allocation5 + $0x38] sm:$0xf]
        %v347 = vld [vmem:[#allocation5 + $0x3c] sm:$0xf]
        %v348 = vld [vmem:[%s2] sm:$0x1]
        %v350 = vlaneseq
        %v351 = vshrl.u32 %v350, 7
        %v352 = vsub.s32 0, %v351
        %v353 = vrot.slane %v348, %v352
        %v387 = vunpack.c.l.b16 %v300
        %v388 = vunpack.c.l.b16 %v301
        %v389 = vunpack.c.l.b16 %v302
        %v390 = vunpack.c.l.b16 %v303
        %v391 = vunpack.c.l.b16 %v304
        %v392 = vunpack.c.l.b16 %v305
        %v393 = vunpack.c.l.b16 %v306
        %v394 = vunpack.c.l.b16 %v307
        %v395 = vunpack.c.l.b16 %v308
        %v396 = vunpack.c.l.b16 %v309
        %v397 = vunpack.c.l.b16 %v310
        %v398 = vunpack.c.l.b16 %v311
        %v399 = vunpack.c.l.b16 %v312
        %v400 = vunpack.c.l.b16 %v313
        %v401 = vunpack.c.l.b16 %v314
        %v402 = vunpack.c.l.b16 %v315
        %v403 = vunpack.c.l.b16 %v316
        %v404 = vunpack.c.l.b16 %v317
        %v405 = vunpack.c.l.b16 %v318
        %v406 = vunpack.c.l.b16 %v319
        %v407 = vunpack.c.l.b16 %v320
        %v408 = vunpack.c.l.b16 %v321
        %v409 = vunpack.c.l.b16 %v322
        %v410 = vunpack.c.l.b16 %v323
        %v411 = vunpack.c.l.b16 %v324
        %v412 = vunpack.c.l.b16 %v325
        %v413 = vunpack.c.l.b16 %v326
        %v414 = vunpack.c.l.b16 %v327
        %v415 = vunpack.c.l.b16 %v328
        %v416 = vunpack.c.l.b16 %v329
        %v417 = vunpack.c.l.b16 %v330
        %v418 = vunpack.c.l.b16 %v331
        %v419 = vpack.c.b16 %v388, %v387
        %v420 = vpack.c.b16 %v390, %v389
        %v421 = vpack.c.b16 %v392, %v391
        %v422 = vpack.c.b16 %v394, %v393
        %v423 = vpack.c.b16 %v396, %v395
        %v424 = vpack.c.b16 %v398, %v397
        %v425 = vpack.c.b16 %v400, %v399
        %v426 = vpack.c.b16 %v402, %v401
        %v427 = vpack.c.b16 %v404, %v403
        %v428 = vpack.c.b16 %v406, %v405
        %v429 = vpack.c.b16 %v408, %v407
        %v430 = vpack.c.b16 %v410, %v409
        %v431 = vpack.c.b16 %v412, %v411
        %v432 = vpack.c.b16 %v414, %v413
        %v433 = vpack.c.b16 %v416, %v415
        %v434 = vpack.c.b16 %v418, %v417
        %v467 = vunpack.c.l.b16 %v332
        %v468 = vunpack.c.l.b16 %v333
        %v469 = vunpack.c.l.b16 %v334
        %v470 = vunpack.c.l.b16 %v335
        %v471 = vunpack.c.l.b16 %v336
        %v472 = vunpack.c.l.b16 %v337
        %v473 = vunpack.c.l.b16 %v338
        %v474 = vunpack.c.l.b16 %v339
        %v475 = vunpack.c.l.b16 %v340
        %v476 = vunpack.c.l.b16 %v341
        %v477 = vunpack.c.l.b16 %v342
        %v478 = vunpack.c.l.b16 %v343
        %v479 = vunpack.c.l.b16 %v344
        %v480 = vunpack.c.l.b16 %v345
        %v481 = vunpack.c.l.b16 %v346
        %v482 = vunpack.c.l.b16 %v347
        %v483 = vpack.c.b16 %v468, %v467
        %v484 = vpack.c.b16 %v470, %v469
        %v485 = vpack.c.b16 %v472, %v471
        %v486 = vpack.c.b16 %v474, %v473
        %v487 = vpack.c.b16 %v476, %v475
        %v488 = vpack.c.b16 %v478, %v477
        %v489 = vpack.c.b16 %v480, %v479
        %v490 = vpack.c.b16 %v482, %v481
        %499 = vmatprep.subr.bf16.mxu0 0
        %500 = vmatpush1.bf16.msra.mxu0 %v490
        %501 = vmatprep.subr.bf16.mxu0 0
        %502 = vmatpush1.bf16.msra.mxu0 %v489
        %503 = vmatprep.subr.bf16.mxu0 0
        %504 = vmatpush1.bf16.msra.mxu0 %v488
        %505 = vmatprep.subr.bf16.mxu0 0
        %506 = vmatpush1.bf16.msra.mxu0 %v487
        %507 = vmatprep.subr.bf16.mxu0 0
        %508 = vmatpush1.bf16.msra.mxu0 %v486
        %509 = vmatprep.subr.bf16.mxu0 0
        %510 = vmatpush1.bf16.msra.mxu0 %v485
        %511 = vmatprep.subr.bf16.mxu0 0
        %512 = vmatpush1.bf16.msra.mxu0 %v484
        %513 = vmatprep.subr.bf16.mxu0 0
        %514 = vmatpush1.bf16.msra.mxu0 %v483
        %515 = vmatprep.subr.bf16.mxu0 0
        %516 = vmatpush2.bf16.msra.mxu0 0
        %517 = vmatprep.subr.bf16.mxu0 0
        %518 = vmatpush2.bf16.msra.mxu0 0
        %519 = vmatprep.subr.bf16.mxu0 0
        %520 = vmatpush2.bf16.msra.mxu0 0
        %521 = vmatprep.subr.bf16.mxu0 0
        %522 = vmatpush2.bf16.msra.mxu0 0
        %523 = vmatprep.subr.bf16.mxu0 0
        %524 = vmatpush2.bf16.msra.mxu0 0
        %525 = vmatprep.subr.bf16.mxu0 0
        %526 = vmatpush2.bf16.msra.mxu0 0
        %527 = vmatprep.subr.bf16.mxu0 0
        %528 = vmatpush2.bf16.msra.mxu0 0
        %529 = vmatprep.subr.bf16.mxu0 0
        %530 = vmatpush2.bf16.msra.mxu0 0
        %531 = vmatprep.mubr.bf16.mxu0 0
        %532 = vmatmul.mubr.bf16.gmra.mxu0 %v419
        %v533 = vpop.f32.mrf.mxu0
        %v534 = vadd.f32 %v353, %v533
        %v535 = vpop.f32.mrf.mxu0
        %v536 = vpop.f32.mrf.mxu0
        %v537 = vadd.f32 %v353, %v536
        %v538 = vpop.f32.mrf.mxu0
        %539 = vmatprep.mubr.bf16.mxu0 0
        %540 = vmatmul.mubr.bf16.gmra.mxu0 %v420
        %v541 = vpop.f32.mrf.mxu0
        %v542 = vadd.f32 %v353, %v541
        %v543 = vpop.f32.mrf.mxu0
        %v544 = vpop.f32.mrf.mxu0
        %v545 = vadd.f32 %v353, %v544
        %v546 = vpop.f32.mrf.mxu0
        %547 = vmatprep.mubr.bf16.mxu0 0
        %548 = vmatmul.mubr.bf16.gmra.mxu0 %v421
        %v549 = vpop.f32.mrf.mxu0
        %v550 = vadd.f32 %v353, %v549
        %v551 = vpop.f32.mrf.mxu0
        %v552 = vpop.f32.mrf.mxu0
        %v553 = vadd.f32 %v353, %v552
        %v554 = vpop.f32.mrf.mxu0
        %555 = vmatprep.mubr.bf16.mxu0 0
        %556 = vmatmul.mubr.bf16.gmra.mxu0 %v422
        %v557 = vpop.f32.mrf.mxu0
        %v558 = vadd.f32 %v353, %v557
        %v559 = vpop.f32.mrf.mxu0
        %v560 = vpop.f32.mrf.mxu0
        %v561 = vadd.f32 %v353, %v560
        %v562 = vpop.f32.mrf.mxu0
        %563 = vmatprep.mubr.bf16.mxu0 0
        %564 = vmatmul.mubr.bf16.gmra.mxu0 %v423
        %v565 = vpop.f32.mrf.mxu0
        %v566 = vadd.f32 %v353, %v565
        %v567 = vpop.f32.mrf.mxu0
        %v568 = vpop.f32.mrf.mxu0
        %v569 = vadd.f32 %v353, %v568
        %v570 = vpop.f32.mrf.mxu0
        %571 = vmatprep.mubr.bf16.mxu0 0
        %572 = vmatmul.mubr.bf16.gmra.mxu0 %v424
        %v573 = vpop.f32.mrf.mxu0
        %v574 = vadd.f32 %v353, %v573
        %v575 = vpop.f32.mrf.mxu0
        %v576 = vpop.f32.mrf.mxu0
        %v577 = vadd.f32 %v353, %v576
        %v578 = vpop.f32.mrf.mxu0
        %579 = vmatprep.mubr.bf16.mxu0 0
        %580 = vmatmul.mubr.bf16.gmra.mxu0 %v425
        %v581 = vpop.f32.mrf.mxu0
        %v582 = vadd.f32 %v353, %v581
        %v583 = vpop.f32.mrf.mxu0
        %v584 = vpop.f32.mrf.mxu0
        %v585 = vadd.f32 %v353, %v584
        %v586 = vpop.f32.mrf.mxu0
        %587 = vmatprep.mubr.bf16.mxu0 0
        %588 = vmatmul.mubr.bf16.gmra.mxu0 %v426
        %v589 = vpop.f32.mrf.mxu0
        %v590 = vadd.f32 %v353, %v589
        %v591 = vpop.f32.mrf.mxu0
        %v592 = vpop.f32.mrf.mxu0
        %v593 = vadd.f32 %v353, %v592
        %v594 = vpop.f32.mrf.mxu0
        %595 = vmatprep.mubr.bf16.mxu0 0
        %596 = vmatmul.mubr.bf16.gmra.mxu0 %v427
        %v597 = vpop.f32.mrf.mxu0
        %v598 = vadd.f32 %v353, %v597
        %v599 = vpop.f32.mrf.mxu0
        %v600 = vpop.f32.mrf.mxu0
        %v601 = vadd.f32 %v353, %v600
        %v602 = vpop.f32.mrf.mxu0
        %603 = vmatprep.mubr.bf16.mxu0 0
        %604 = vmatmul.mubr.bf16.gmra.mxu0 %v428
        %v605 = vpop.f32.mrf.mxu0
        %v606 = vadd.f32 %v353, %v605
        %v607 = vpop.f32.mrf.mxu0
        %v608 = vpop.f32.mrf.mxu0
        %v609 = vadd.f32 %v353, %v608
        %v610 = vpop.f32.mrf.mxu0
        %611 = vmatprep.mubr.bf16.mxu0 0
        %612 = vmatmul.mubr.bf16.gmra.mxu0 %v429
        %v613 = vpop.f32.mrf.mxu0
        %v614 = vadd.f32 %v353, %v613
        %v615 = vpop.f32.mrf.mxu0
        %v616 = vpop.f32.mrf.mxu0
        %v617 = vadd.f32 %v353, %v616
        %v618 = vpop.f32.mrf.mxu0
        %619 = vmatprep.mubr.bf16.mxu0 0
        %620 = vmatmul.mubr.bf16.gmra.mxu0 %v430
        %v621 = vpop.f32.mrf.mxu0
        %v622 = vadd.f32 %v353, %v621
        %v623 = vpop.f32.mrf.mxu0
        %v624 = vpop.f32.mrf.mxu0
        %v625 = vadd.f32 %v353, %v624
        %v626 = vpop.f32.mrf.mxu0
        %627 = vmatprep.mubr.bf16.mxu0 0
        %628 = vmatmul.mubr.bf16.gmra.mxu0 %v431
        %v629 = vpop.f32.mrf.mxu0
        %v630 = vadd.f32 %v353, %v629
        %v631 = vpop.f32.mrf.mxu0
        %v632 = vpop.f32.mrf.mxu0
        %v633 = vadd.f32 %v353, %v632
        %v634 = vpop.f32.mrf.mxu0
        %635 = vmatprep.mubr.bf16.mxu0 0
        %636 = vmatmul.mubr.bf16.gmra.mxu0 %v432
        %v637 = vpop.f32.mrf.mxu0
        %v638 = vadd.f32 %v353, %v637
        %v639 = vpop.f32.mrf.mxu0
        %v640 = vpop.f32.mrf.mxu0
        %v641 = vadd.f32 %v353, %v640
        %v642 = vpop.f32.mrf.mxu0
        %643 = vmatprep.mubr.bf16.mxu0 0
        %644 = vmatmul.mubr.bf16.gmra.mxu0 %v433
        %v645 = vpop.f32.mrf.mxu0
        %v646 = vadd.f32 %v353, %v645
        %v647 = vpop.f32.mrf.mxu0
        %v648 = vpop.f32.mrf.mxu0
        %v649 = vadd.f32 %v353, %v648
        %v650 = vpop.f32.mrf.mxu0
        %651 = vmatprep.mubr.bf16.mxu0 0
        %652 = vmatmul.mubr.bf16.gmra.mxu0 %v434
        %v653 = vpop.f32.mrf.mxu0
        %v654 = vadd.f32 %v353, %v653
        %v655 = vpop.f32.mrf.mxu0
        %v656 = vpop.f32.mrf.mxu0
        %v657 = vadd.f32 %v353, %v656
        %v658 = vpop.f32.mrf.mxu0
        %659 = vdwg.mxu0
        %v660 = vmax.f32 %v534, 0.0
        %v661 = vmax.f32 %v537, 0.0
        %v662 = vmax.f32 %v542, 0.0
        %v663 = vmax.f32 %v545, 0.0
        %v664 = vmax.f32 %v550, 0.0
        %v665 = vmax.f32 %v553, 0.0
        %v666 = vmax.f32 %v558, 0.0
        %v667 = vmax.f32 %v561, 0.0
        %v668 = vmax.f32 %v566, 0.0
        %v669 = vmax.f32 %v569, 0.0
        %v670 = vmax.f32 %v574, 0.0
        %v671 = vmax.f32 %v577, 0.0
        %v672 = vmax.f32 %v582, 0.0
        %v673 = vmax.f32 %v585, 0.0
        %v674 = vmax.f32 %v590, 0.0
        %v675 = vmax.f32 %v593, 0.0
        %v676 = vmax.f32 %v598, 0.0
        %v677 = vmax.f32 %v601, 0.0
        %v678 = vmax.f32 %v606, 0.0
        %v679 = vmax.f32 %v609, 0.0
        %v680 = vmax.f32 %v614, 0.0
        %v681 = vmax.f32 %v617, 0.0
        %v682 = vmax.f32 %v622, 0.0
        %v683 = vmax.f32 %v625, 0.0
        %v684 = vmax.f32 %v630, 0.0
        %v685 = vmax.f32 %v633, 0.0
        %v686 = vmax.f32 %v638, 0.0
        %v687 = vmax.f32 %v641, 0.0
        %v688 = vmax.f32 %v646, 0.0
        %v689 = vmax.f32 %v649, 0.0
        %v690 = vmax.f32 %v654, 0.0
        %v691 = vmax.f32 %v657, 0.0
        %v692 = vpack.c.bf16 %v661, %v660
        %v693 = vpack.c.bf16 %v663, %v662
        %v694 = vpack.c.bf16 %v665, %v664
        %v695 = vpack.c.bf16 %v667, %v666
        %v696 = vpack.c.bf16 %v669, %v668
        %v697 = vpack.c.bf16 %v671, %v670
        %v698 = vpack.c.bf16 %v673, %v672
        %v699 = vpack.c.bf16 %v675, %v674
        %v700 = vpack.c.bf16 %v677, %v676
        %v701 = vpack.c.bf16 %v679, %v678
        %v702 = vpack.c.bf16 %v681, %v680
        %v703 = vpack.c.bf16 %v683, %v682
        %v704 = vpack.c.bf16 %v685, %v684
        %v705 = vpack.c.bf16 %v687, %v686
        %v706 = vpack.c.bf16 %v689, %v688
        %v707 = vpack.c.bf16 %v691, %v690
        %v724 = vunpack.c.l.b16 %v692
        %v725 = vunpack.c.h.b16 %v692
        %v726 = vunpack.c.l.b16 %v693
        %v727 = vunpack.c.h.b16 %v693
        %v728 = vunpack.c.l.b16 %v694
        %v729 = vunpack.c.h.b16 %v694
        %v730 = vunpack.c.l.b16 %v695
        %v731 = vunpack.c.h.b16 %v695
        %v732 = vunpack.c.l.b16 %v696
        %v733 = vunpack.c.h.b16 %v696
        %v734 = vunpack.c.l.b16 %v697
        %v735 = vunpack.c.h.b16 %v697
        %v736 = vunpack.c.l.b16 %v698
        %v737 = vunpack.c.h.b16 %v698
        %v738 = vunpack.c.l.b16 %v699
        %v739 = vunpack.c.h.b16 %v699
        %v740 = vunpack.c.l.b16 %v700
        %v741 = vunpack.c.h.b16 %v700
        %v742 = vunpack.c.l.b16 %v701
        %v743 = vunpack.c.h.b16 %v701
        %v744 = vunpack.c.l.b16 %v702
        %v745 = vunpack.c.h.b16 %v702
        %v746 = vunpack.c.l.b16 %v703
        %v747 = vunpack.c.h.b16 %v703
        %v748 = vunpack.c.l.b16 %v704
        %v749 = vunpack.c.h.b16 %v704
        %v750 = vunpack.c.l.b16 %v705
        %v751 = vunpack.c.h.b16 %v705
        %v752 = vunpack.c.l.b16 %v706
        %v753 = vunpack.c.h.b16 %v706
        %v754 = vunpack.c.l.b16 %v707
        %v755 = vunpack.c.h.b16 %v707
        %v756 = vpack.c.b16 %v724, %v724
        %v757 = vpack.c.b16 %v725, %v725
        %v758 = vpack.c.b16 %v726, %v726
        %v759 = vpack.c.b16 %v727, %v727
        %v760 = vpack.c.b16 %v728, %v728
        %v761 = vpack.c.b16 %v729, %v729
        %v762 = vpack.c.b16 %v730, %v730
        %v763 = vpack.c.b16 %v731, %v731
        %v764 = vpack.c.b16 %v732, %v732
        %v765 = vpack.c.b16 %v733, %v733
        %v766 = vpack.c.b16 %v734, %v734
        %v767 = vpack.c.b16 %v735, %v735
        %v768 = vpack.c.b16 %v736, %v736
        %v769 = vpack.c.b16 %v737, %v737
        %v770 = vpack.c.b16 %v738, %v738
        %v771 = vpack.c.b16 %v739, %v739
        %v772 = vpack.c.b16 %v740, %v740
        %v773 = vpack.c.b16 %v741, %v741
        %v774 = vpack.c.b16 %v742, %v742
        %v775 = vpack.c.b16 %v743, %v743
        %v776 = vpack.c.b16 %v744, %v744
        %v777 = vpack.c.b16 %v745, %v745
        %v778 = vpack.c.b16 %v746, %v746
        %v779 = vpack.c.b16 %v747, %v747
        %v780 = vpack.c.b16 %v748, %v748
        %v781 = vpack.c.b16 %v749, %v749
        %v782 = vpack.c.b16 %v750, %v750
        %v783 = vpack.c.b16 %v751, %v751
        %v784 = vpack.c.b16 %v752, %v752
        %v785 = vpack.c.b16 %v753, %v753
        %v786 = vpack.c.b16 %v754, %v754
        %v787 = vpack.c.b16 %v755, %v755
        %820 = vst [vmem:[%s288] sm:$0xf] %v756
        %821 = vst [vmem:[%s288 + $0x4] sm:$0xf] %v757
        %822 = vst [vmem:[%s288 + $0x8] sm:$0xf] %v758
        %823 = vst [vmem:[%s288 + $0xc] sm:$0xf] %v759
        %824 = vst [vmem:[%s288 + $0x10] sm:$0xf] %v760
        %825 = vst [vmem:[%s288 + $0x14] sm:$0xf] %v761
        %826 = vst [vmem:[%s288 + $0x18] sm:$0xf] %v762
        %827 = vst [vmem:[%s288 + $0x1c] sm:$0xf] %v763
        %828 = vst [vmem:[%s288 + $0x20] sm:$0xf] %v764
        %829 = vst [vmem:[%s288 + $0x24] sm:$0xf] %v765
        %830 = vst [vmem:[%s288 + $0x28] sm:$0xf] %v766
        %831 = vst [vmem:[%s288 + $0x2c] sm:$0xf] %v767
        %832 = vst [vmem:[%s288 + $0x30] sm:$0xf] %v768
        %833 = vst [vmem:[%s288 + $0x34] sm:$0xf] %v769
        %834 = vst [vmem:[%s288 + $0x38] sm:$0xf] %v770
        %835 = vst [vmem:[%s288 + $0x3c] sm:$0xf] %v771
        %836 = vst [vmem:[%s288 + $0x40] sm:$0xf] %v772
        %837 = vst [vmem:[%s288 + $0x44] sm:$0xf] %v773
        %838 = vst [vmem:[%s288 + $0x48] sm:$0xf] %v774
        %839 = vst [vmem:[%s288 + $0x4c] sm:$0xf] %v775
        %840 = vst [vmem:[%s288 + $0x50] sm:$0xf] %v776
        %841 = vst [vmem:[%s288 + $0x54] sm:$0xf] %v777
        %842 = vst [vmem:[%s288 + $0x58] sm:$0xf] %v778
        %843 = vst [vmem:[%s288 + $0x5c] sm:$0xf] %v779
        %844 = vst [vmem:[%s288 + $0x60] sm:$0xf] %v780
        %845 = vst [vmem:[%s288 + $0x64] sm:$0xf] %v781
        %846 = vst [vmem:[%s288 + $0x68] sm:$0xf] %v782
        %847 = vst [vmem:[%s288 + $0x6c] sm:$0xf] %v783
        %848 = vst [vmem:[%s288 + $0x70] sm:$0xf] %v784
        %849 = vst [vmem:[%s288 + $0x74] sm:$0xf] %v785
        %850 = vst [vmem:[%s288 + $0x78] sm:$0xf] %v786
        %851 = vst [vmem:[%s288 + $0x7c] sm:$0xf] %v787
        %v852 = vld [vmem:[%s258] sm:$0xf]
        %v853 = vld [vmem:[%s258 + $0x4] sm:$0xf]
        %v854 = vld [vmem:[%s258 + $0x8] sm:$0xf]
        %v855 = vld [vmem:[%s258 + $0xc] sm:$0xf]
        %v856 = vld [vmem:[%s258 + $0x10] sm:$0xf]
        %v857 = vld [vmem:[%s258 + $0x14] sm:$0xf]
        %v858 = vld [vmem:[%s258 + $0x18] sm:$0xf]
        %v859 = vld [vmem:[%s258 + $0x1c] sm:$0xf]
        %v860 = vld [vmem:[%s258 + $0x20] sm:$0xf]
        %v861 = vld [vmem:[%s258 + $0x24] sm:$0xf]
        %v862 = vld [vmem:[%s258 + $0x28] sm:$0xf]
        %v863 = vld [vmem:[%s258 + $0x2c] sm:$0xf]
        %v864 = vld [vmem:[%s258 + $0x30] sm:$0xf]
        %v865 = vld [vmem:[%s258 + $0x34] sm:$0xf]
        %v866 = vld [vmem:[%s258 + $0x38] sm:$0xf]
        %v867 = vld [vmem:[%s258 + $0x3c] sm:$0xf]
        %v868 = vld [vmem:[%s258 + $0x40] sm:$0xf]
        %v869 = vld [vmem:[%s258 + $0x44] sm:$0xf]
        %v870 = vld [vmem:[%s258 + $0x48] sm:$0xf]
        %v871 = vld [vmem:[%s258 + $0x4c] sm:$0xf]
        %v872 = vld [vmem:[%s258 + $0x50] sm:$0xf]
        %v873 = vld [vmem:[%s258 + $0x54] sm:$0xf]
        %v874 = vld [vmem:[%s258 + $0x58] sm:$0xf]
        %v875 = vld [vmem:[%s258 + $0x5c] sm:$0xf]
        %v876 = vld [vmem:[%s258 + $0x60] sm:$0xf]
        %v877 = vld [vmem:[%s258 + $0x64] sm:$0xf]
        %v878 = vld [vmem:[%s258 + $0x68] sm:$0xf]
        %v879 = vld [vmem:[%s258 + $0x6c] sm:$0xf]
        %v880 = vld [vmem:[%s258 + $0x70] sm:$0xf]
        %v881 = vld [vmem:[%s258 + $0x74] sm:$0xf]
        %v882 = vld [vmem:[%s258 + $0x78] sm:$0xf]
        %v883 = vld [vmem:[%s258 + $0x7c] sm:$0xf]
        %v884 = vld [vmem:[%s3] sm:$0x3]
        %v885 = vld [vmem:[%s4] sm:$0x1]
        %v887 = vlaneseq
        %v888 = vshrl.u32 %v887, 7
        %v889 = vsub.s32 0, %v888
        %v890 = vrot.slane %v885, %v889
        %v924 = vunpack.c.l.b16 %v852
        %v925 = vunpack.c.l.b16 %v853
        %v926 = vunpack.c.l.b16 %v854
        %v927 = vunpack.c.l.b16 %v855
        %v928 = vunpack.c.l.b16 %v856
        %v929 = vunpack.c.l.b16 %v857
        %v930 = vunpack.c.l.b16 %v858
        %v931 = vunpack.c.l.b16 %v859
        %v932 = vunpack.c.l.b16 %v860
        %v933 = vunpack.c.l.b16 %v861
        %v934 = vunpack.c.l.b16 %v862
        %v935 = vunpack.c.l.b16 %v863
        %v936 = vunpack.c.l.b16 %v864
        %v937 = vunpack.c.l.b16 %v865
        %v938 = vunpack.c.l.b16 %v866
        %v939 = vunpack.c.l.b16 %v867
        %v940 = vunpack.c.l.b16 %v868
        %v941 = vunpack.c.l.b16 %v869
        %v942 = vunpack.c.l.b16 %v870
        %v943 = vunpack.c.l.b16 %v871
        %v944 = vunpack.c.l.b16 %v872
        %v945 = vunpack.c.l.b16 %v873
        %v946 = vunpack.c.l.b16 %v874
        %v947 = vunpack.c.l.b16 %v875
        %v948 = vunpack.c.l.b16 %v876
        %v949 = vunpack.c.l.b16 %v877
        %v950 = vunpack.c.l.b16 %v878
        %v951 = vunpack.c.l.b16 %v879
        %v952 = vunpack.c.l.b16 %v880
        %v953 = vunpack.c.l.b16 %v881
        %v954 = vunpack.c.l.b16 %v882
        %v955 = vunpack.c.l.b16 %v883
        %v956 = vpack.c.b16 %v925, %v924
        %v957 = vpack.c.b16 %v927, %v926
        %v958 = vpack.c.b16 %v929, %v928
        %v959 = vpack.c.b16 %v931, %v930
        %v960 = vpack.c.b16 %v933, %v932
        %v961 = vpack.c.b16 %v935, %v934
        %v962 = vpack.c.b16 %v937, %v936
        %v963 = vpack.c.b16 %v939, %v938
        %v964 = vpack.c.b16 %v941, %v940
        %v965 = vpack.c.b16 %v943, %v942
        %v966 = vpack.c.b16 %v945, %v944
        %v967 = vpack.c.b16 %v947, %v946
        %v968 = vpack.c.b16 %v949, %v948
        %v969 = vpack.c.b16 %v951, %v950
        %v970 = vpack.c.b16 %v953, %v952
        %v971 = vpack.c.b16 %v955, %v954
        %972 = vrot.lane.b32.xlu0 %v956, 112
        %v973 = vpop.permute.xlu0 %972
        %974 = vrot.lane.b32.xlu0 %v957, 112
        %v975 = vpop.permute.xlu0 %974
        %976 = vrot.lane.b32.xlu0 %v958, 112
        %v977 = vpop.permute.xlu0 %976
        %978 = vrot.lane.b32.xlu0 %v959, 112
        %v979 = vpop.permute.xlu0 %978
        %980 = vrot.lane.b32.xlu0 %v960, 112
        %v981 = vpop.permute.xlu0 %980
        %982 = vrot.lane.b32.xlu0 %v961, 112
        %v983 = vpop.permute.xlu0 %982
        %984 = vrot.lane.b32.xlu0 %v962, 112
        %v985 = vpop.permute.xlu0 %984
        %986 = vrot.lane.b32.xlu0 %v963, 112
        %v987 = vpop.permute.xlu0 %986
        %988 = vrot.lane.b32.xlu0 %v964, 112
        %v989 = vpop.permute.xlu0 %988
        %990 = vrot.lane.b32.xlu0 %v965, 112
        %v991 = vpop.permute.xlu0 %990
        %992 = vrot.lane.b32.xlu0 %v966, 112
        %v993 = vpop.permute.xlu0 %992
        %994 = vrot.lane.b32.xlu0 %v967, 112
        %v995 = vpop.permute.xlu0 %994
        %996 = vrot.lane.b32.xlu0 %v968, 112
        %v997 = vpop.permute.xlu0 %996
        %998 = vrot.lane.b32.xlu0 %v969, 112
        %v999 = vpop.permute.xlu0 %998
        %1000 = vrot.lane.b32.xlu0 %v970, 112
        %v1001 = vpop.permute.xlu0 %1000
        %1002 = vrot.lane.b32.xlu0 %v971, 112
        %v1003 = vpop.permute.xlu0 %1002
        %vm1004 = vcmask 31744
        %v1006 = vsel %vm1004, %v973, 0
        %v1009 = vsel %vm1004, %v975, 0
        %v1012 = vsel %vm1004, %v977, 0
        %v1015 = vsel %vm1004, %v979, 0
        %v1018 = vsel %vm1004, %v981, 0
        %v1021 = vsel %vm1004, %v983, 0
        %v1024 = vsel %vm1004, %v985, 0
        %v1027 = vsel %vm1004, %v987, 0
        %v1030 = vsel %vm1004, %v989, 0
        %v1033 = vsel %vm1004, %v991, 0
        %v1036 = vsel %vm1004, %v993, 0
        %v1039 = vsel %vm1004, %v995, 0
        %v1042 = vsel %vm1004, %v997, 0
        %v1045 = vsel %vm1004, %v999, 0
        %v1048 = vsel %vm1004, %v1001, 0
        %v1051 = vsel %vm1004, %v1003, 0
        %vm1053 = vcmask 1041408
        %v1055 = vsel %vm1053, %v884, 0
        %1057 = vmatprep.subr.bf16.mxu0 0
        %1058 = vmatpush1.bf16.msra.mxu0 0
        %1059 = vmatprep.subr.bf16.mxu0 0
        %1060 = vmatpush1.bf16.msra.mxu0 0
        %1061 = vmatprep.subr.bf16.mxu0 0
        %1062 = vmatpush1.bf16.msra.mxu0 0
        %1063 = vmatprep.subr.bf16.mxu0 0
        %1064 = vmatpush1.bf16.msra.mxu0 0
        %1065 = vmatprep.subr.bf16.mxu0 0
        %1066 = vmatpush1.bf16.msra.mxu0 0
        %1067 = vmatprep.subr.bf16.mxu0 0
        %1068 = vmatpush1.bf16.msra.mxu0 0
        %1069 = vmatprep.subr.bf16.mxu0 0
        %1070 = vmatpush1.bf16.msra.mxu0 0
        %1071 = vmatprep.subr.bf16.mxu0 0
        %1072 = vmatpush1.bf16.msra.mxu0 %v1055
        %1073 = vmatprep.subr.bf16.mxu0 0
        %1074 = vmatpush2.bf16.msra.mxu0 0
        %1075 = vmatprep.subr.bf16.mxu0 0
        %1076 = vmatpush2.bf16.msra.mxu0 0
        %1077 = vmatprep.subr.bf16.mxu0 0
        %1078 = vmatpush2.bf16.msra.mxu0 0
        %1079 = vmatprep.subr.bf16.mxu0 0
        %1080 = vmatpush2.bf16.msra.mxu0 0
        %1081 = vmatprep.subr.bf16.mxu0 0
        %1082 = vmatpush2.bf16.msra.mxu0 0
        %1083 = vmatprep.subr.bf16.mxu0 0
        %1084 = vmatpush2.bf16.msra.mxu0 0
        %1085 = vmatprep.subr.bf16.mxu0 0
        %1086 = vmatpush2.bf16.msra.mxu0 0
        %1087 = vmatprep.subr.bf16.mxu0 0
        %1088 = vmatpush2.bf16.msra.mxu0 0
        %1089 = vmatprep.mubr.bf16.mxu0 0
        %1090 = vmatmul.mubr.bf16.gmra.mxu0 %v1006
        %v1091 = vpop.f32.mrf.mxu0
        %v1092 = vadd.f32 %v890, %v1091
        %v1093 = vpop.f32.mrf.mxu0
        %v1094 = vpop.f32.mrf.mxu0
        %v1095 = vadd.f32 %v890, %v1094
        %v1096 = vpop.f32.mrf.mxu0
        %1097 = vmatprep.mubr.bf16.mxu0 0
        %1098 = vmatmul.mubr.bf16.gmra.mxu0 %v1009
        %v1099 = vpop.f32.mrf.mxu0
        %v1100 = vadd.f32 %v890, %v1099
        %v1101 = vpop.f32.mrf.mxu0
        %v1102 = vpop.f32.mrf.mxu0
        %v1103 = vadd.f32 %v890, %v1102
        %v1104 = vpop.f32.mrf.mxu0
        %1105 = vmatprep.mubr.bf16.mxu0 0
        %1106 = vmatmul.mubr.bf16.gmra.mxu0 %v1012
        %v1107 = vpop.f32.mrf.mxu0
        %v1108 = vadd.f32 %v890, %v1107
        %v1109 = vpop.f32.mrf.mxu0
        %v1110 = vpop.f32.mrf.mxu0
        %v1111 = vadd.f32 %v890, %v1110
        %v1112 = vpop.f32.mrf.mxu0
        %1113 = vmatprep.mubr.bf16.mxu0 0
        %1114 = vmatmul.mubr.bf16.gmra.mxu0 %v1015
        %v1115 = vpop.f32.mrf.mxu0
        %v1116 = vadd.f32 %v890, %v1115
        %v1117 = vpop.f32.mrf.mxu0
        %v1118 = vpop.f32.mrf.mxu0
        %v1119 = vadd.f32 %v890, %v1118
        %v1120 = vpop.f32.mrf.mxu0
        %1121 = vmatprep.mubr.bf16.mxu0 0
        %1122 = vmatmul.mubr.bf16.gmra.mxu0 %v1018
        %v1123 = vpop.f32.mrf.mxu0
        %v1124 = vadd.f32 %v890, %v1123
        %v1125 = vpop.f32.mrf.mxu0
        %v1126 = vpop.f32.mrf.mxu0
        %v1127 = vadd.f32 %v890, %v1126
        %v1128 = vpop.f32.mrf.mxu0
        %1129 = vmatprep.mubr.bf16.mxu0 0
        %1130 = vmatmul.mubr.bf16.gmra.mxu0 %v1021
        %v1131 = vpop.f32.mrf.mxu0
        %v1132 = vadd.f32 %v890, %v1131
        %v1133 = vpop.f32.mrf.mxu0
        %v1134 = vpop.f32.mrf.mxu0
        %v1135 = vadd.f32 %v890, %v1134
        %v1136 = vpop.f32.mrf.mxu0
        %1137 = vmatprep.mubr.bf16.mxu0 0
        %1138 = vmatmul.mubr.bf16.gmra.mxu0 %v1024
        %v1139 = vpop.f32.mrf.mxu0
        %v1140 = vadd.f32 %v890, %v1139
        %v1141 = vpop.f32.mrf.mxu0
        %v1142 = vpop.f32.mrf.mxu0
        %v1143 = vadd.f32 %v890, %v1142
        %v1144 = vpop.f32.mrf.mxu0
        %1145 = vmatprep.mubr.bf16.mxu0 0
        %1146 = vmatmul.mubr.bf16.gmra.mxu0 %v1027
        %v1147 = vpop.f32.mrf.mxu0
        %v1148 = vadd.f32 %v890, %v1147
        %v1149 = vpop.f32.mrf.mxu0
        %v1150 = vpop.f32.mrf.mxu0
        %v1151 = vadd.f32 %v890, %v1150
        %v1152 = vpop.f32.mrf.mxu0
        %1153 = vmatprep.mubr.bf16.mxu0 0
        %1154 = vmatmul.mubr.bf16.gmra.mxu0 %v1030
        %v1155 = vpop.f32.mrf.mxu0
        %v1156 = vadd.f32 %v890, %v1155
        %v1157 = vpop.f32.mrf.mxu0
        %v1158 = vpop.f32.mrf.mxu0
        %v1159 = vadd.f32 %v890, %v1158
        %v1160 = vpop.f32.mrf.mxu0
        %1161 = vmatprep.mubr.bf16.mxu0 0
        %1162 = vmatmul.mubr.bf16.gmra.mxu0 %v1033
        %v1163 = vpop.f32.mrf.mxu0
        %v1164 = vadd.f32 %v890, %v1163
        %v1165 = vpop.f32.mrf.mxu0
        %v1166 = vpop.f32.mrf.mxu0
        %v1167 = vadd.f32 %v890, %v1166
        %v1168 = vpop.f32.mrf.mxu0
        %1169 = vmatprep.mubr.bf16.mxu0 0
        %1170 = vmatmul.mubr.bf16.gmra.mxu0 %v1036
        %v1171 = vpop.f32.mrf.mxu0
        %v1172 = vadd.f32 %v890, %v1171
        %v1173 = vpop.f32.mrf.mxu0
        %v1174 = vpop.f32.mrf.mxu0
        %v1175 = vadd.f32 %v890, %v1174
        %v1176 = vpop.f32.mrf.mxu0
        %1177 = vmatprep.mubr.bf16.mxu0 0
        %1178 = vmatmul.mubr.bf16.gmra.mxu0 %v1039
        %v1179 = vpop.f32.mrf.mxu0
        %v1180 = vadd.f32 %v890, %v1179
        %v1181 = vpop.f32.mrf.mxu0
        %v1182 = vpop.f32.mrf.mxu0
        %v1183 = vadd.f32 %v890, %v1182
        %v1184 = vpop.f32.mrf.mxu0
        %1185 = vmatprep.mubr.bf16.mxu0 0
        %1186 = vmatmul.mubr.bf16.gmra.mxu0 %v1042
        %v1187 = vpop.f32.mrf.mxu0
        %v1188 = vadd.f32 %v890, %v1187
        %v1189 = vpop.f32.mrf.mxu0
        %v1190 = vpop.f32.mrf.mxu0
        %v1191 = vadd.f32 %v890, %v1190
        %v1192 = vpop.f32.mrf.mxu0
        %1193 = vmatprep.mubr.bf16.mxu0 0
        %1194 = vmatmul.mubr.bf16.gmra.mxu0 %v1045
        %v1195 = vpop.f32.mrf.mxu0
        %v1196 = vadd.f32 %v890, %v1195
        %v1197 = vpop.f32.mrf.mxu0
        %v1198 = vpop.f32.mrf.mxu0
        %v1199 = vadd.f32 %v890, %v1198
        %v1200 = vpop.f32.mrf.mxu0
        %1201 = vmatprep.mubr.bf16.mxu0 0
        %1202 = vmatmul.mubr.bf16.gmra.mxu0 %v1048
        %v1203 = vpop.f32.mrf.mxu0
        %v1204 = vadd.f32 %v890, %v1203
        %v1205 = vpop.f32.mrf.mxu0
        %v1206 = vpop.f32.mrf.mxu0
        %v1207 = vadd.f32 %v890, %v1206
        %v1208 = vpop.f32.mrf.mxu0
        %1209 = vmatprep.mubr.bf16.mxu0 0
        %1210 = vmatmul.mubr.bf16.gmra.mxu0 %v1051
        %v1211 = vpop.f32.mrf.mxu0
        %v1212 = vadd.f32 %v890, %v1211
        %v1213 = vpop.f32.mrf.mxu0
        %v1214 = vpop.f32.mrf.mxu0
        %v1215 = vadd.f32 %v890, %v1214
        %v1216 = vpop.f32.mrf.mxu0
        %1217 = vdwg.mxu0
        %v1218 = vpack.c.bf16 %v1095, %v1092
        %v1219 = vpack.c.bf16 %v1103, %v1100
        %v1220 = vpack.c.bf16 %v1111, %v1108
        %v1221 = vpack.c.bf16 %v1119, %v1116
        %v1222 = vpack.c.bf16 %v1127, %v1124
        %v1223 = vpack.c.bf16 %v1135, %v1132
        %v1224 = vpack.c.bf16 %v1143, %v1140
        %v1225 = vpack.c.bf16 %v1151, %v1148
        %v1226 = vpack.c.bf16 %v1159, %v1156
        %v1227 = vpack.c.bf16 %v1167, %v1164
        %v1228 = vpack.c.bf16 %v1175, %v1172
        %v1229 = vpack.c.bf16 %v1183, %v1180
        %v1230 = vpack.c.bf16 %v1191, %v1188
        %v1231 = vpack.c.bf16 %v1199, %v1196
        %v1232 = vpack.c.bf16 %v1207, %v1204
        %v1233 = vpack.c.bf16 %v1215, %v1212
        %v1250 = vunpack.c.l.b16 %v1218
        %v1251 = vunpack.c.h.b16 %v1218
        %v1252 = vunpack.c.l.b16 %v1219
        %v1253 = vunpack.c.h.b16 %v1219
        %v1254 = vunpack.c.l.b16 %v1220
        %v1255 = vunpack.c.h.b16 %v1220
        %v1256 = vunpack.c.l.b16 %v1221
        %v1257 = vunpack.c.h.b16 %v1221
        %v1258 = vunpack.c.l.b16 %v1222
        %v1259 = vunpack.c.h.b16 %v1222
        %v1260 = vunpack.c.l.b16 %v1223
        %v1261 = vunpack.c.h.b16 %v1223
        %v1262 = vunpack.c.l.b16 %v1224
        %v1263 = vunpack.c.h.b16 %v1224
        %v1264 = vunpack.c.l.b16 %v1225
        %v1265 = vunpack.c.h.b16 %v1225
        %v1266 = vunpack.c.l.b16 %v1226
        %v1267 = vunpack.c.h.b16 %v1226
        %v1268 = vunpack.c.l.b16 %v1227
        %v1269 = vunpack.c.h.b16 %v1227
        %v1270 = vunpack.c.l.b16 %v1228
        %v1271 = vunpack.c.h.b16 %v1228
        %v1272 = vunpack.c.l.b16 %v1229
        %v1273 = vunpack.c.h.b16 %v1229
        %v1274 = vunpack.c.l.b16 %v1230
        %v1275 = vunpack.c.h.b16 %v1230
        %v1276 = vunpack.c.l.b16 %v1231
        %v1277 = vunpack.c.h.b16 %v1231
        %v1278 = vunpack.c.l.b16 %v1232
        %v1279 = vunpack.c.h.b16 %v1232
        %v1280 = vunpack.c.l.b16 %v1233
        %v1281 = vunpack.c.h.b16 %v1233
        %v1282 = vpack.c.b16 %v1250, %v1250
        %v1283 = vpack.c.b16 %v1251, %v1251
        %v1284 = vpack.c.b16 %v1252, %v1252
        %v1285 = vpack.c.b16 %v1253, %v1253
        %v1286 = vpack.c.b16 %v1254, %v1254
        %v1287 = vpack.c.b16 %v1255, %v1255
        %v1288 = vpack.c.b16 %v1256, %v1256
        %v1289 = vpack.c.b16 %v1257, %v1257
        %v1290 = vpack.c.b16 %v1258, %v1258
        %v1291 = vpack.c.b16 %v1259, %v1259
        %v1292 = vpack.c.b16 %v1260, %v1260
        %v1293 = vpack.c.b16 %v1261, %v1261
        %v1294 = vpack.c.b16 %v1262, %v1262
        %v1295 = vpack.c.b16 %v1263, %v1263
        %v1296 = vpack.c.b16 %v1264, %v1264
        %v1297 = vpack.c.b16 %v1265, %v1265
        %v1298 = vpack.c.b16 %v1266, %v1266
        %v1299 = vpack.c.b16 %v1267, %v1267
        %v1300 = vpack.c.b16 %v1268, %v1268
        %v1301 = vpack.c.b16 %v1269, %v1269
        %v1302 = vpack.c.b16 %v1270, %v1270
        %v1303 = vpack.c.b16 %v1271, %v1271
        %v1304 = vpack.c.b16 %v1272, %v1272
        %v1305 = vpack.c.b16 %v1273, %v1273
        %v1306 = vpack.c.b16 %v1274, %v1274
        %v1307 = vpack.c.b16 %v1275, %v1275
        %v1308 = vpack.c.b16 %v1276, %v1276
        %v1309 = vpack.c.b16 %v1277, %v1277
        %v1310 = vpack.c.b16 %v1278, %v1278
        %v1311 = vpack.c.b16 %v1279, %v1279
        %v1312 = vpack.c.b16 %v1280, %v1280
        %v1313 = vpack.c.b16 %v1281, %v1281
        %1346 = vst [vmem:[%s295] sm:$0xf] %v1282
        %1347 = vst [vmem:[%s295 + $0x4] sm:$0xf] %v1283
        %1348 = vst [vmem:[%s295 + $0x8] sm:$0xf] %v1284
        %1349 = vst [vmem:[%s295 + $0xc] sm:$0xf] %v1285
        %1350 = vst [vmem:[%s295 + $0x10] sm:$0xf] %v1286
        %1351 = vst [vmem:[%s295 + $0x14] sm:$0xf] %v1287
        %1352 = vst [vmem:[%s295 + $0x18] sm:$0xf] %v1288
        %1353 = vst [vmem:[%s295 + $0x1c] sm:$0xf] %v1289
        %1354 = vst [vmem:[%s295 + $0x20] sm:$0xf] %v1290
        %1355 = vst [vmem:[%s295 + $0x24] sm:$0xf] %v1291
        %1356 = vst [vmem:[%s295 + $0x28] sm:$0xf] %v1292
        %1357 = vst [vmem:[%s295 + $0x2c] sm:$0xf] %v1293
        %1358 = vst [vmem:[%s295 + $0x30] sm:$0xf] %v1294
        %1359 = vst [vmem:[%s295 + $0x34] sm:$0xf] %v1295
        %1360 = vst [vmem:[%s295 + $0x38] sm:$0xf] %v1296
        %1361 = vst [vmem:[%s295 + $0x3c] sm:$0xf] %v1297
        %1362 = vst [vmem:[%s295 + $0x40] sm:$0xf] %v1298
        %1363 = vst [vmem:[%s295 + $0x44] sm:$0xf] %v1299
        %1364 = vst [vmem:[%s295 + $0x48] sm:$0xf] %v1300
        %1365 = vst [vmem:[%s295 + $0x4c] sm:$0xf] %v1301
        %1366 = vst [vmem:[%s295 + $0x50] sm:$0xf] %v1302
        %1367 = vst [vmem:[%s295 + $0x54] sm:$0xf] %v1303
        %1368 = vst [vmem:[%s295 + $0x58] sm:$0xf] %v1304
        %1369 = vst [vmem:[%s295 + $0x5c] sm:$0xf] %v1305
        %1370 = vst [vmem:[%s295 + $0x60] sm:$0xf] %v1306
        %1371 = vst [vmem:[%s295 + $0x64] sm:$0xf] %v1307
        %1372 = vst [vmem:[%s295 + $0x68] sm:$0xf] %v1308
        %1373 = vst [vmem:[%s295 + $0x6c] sm:$0xf] %v1309
        %1374 = vst [vmem:[%s295 + $0x70] sm:$0xf] %v1310
        %1375 = vst [vmem:[%s295 + $0x74] sm:$0xf] %v1311
        %1376 = vst [vmem:[%s295 + $0x78] sm:$0xf] %v1312
        %1377 = vst [vmem:[%s295 + $0x7c] sm:$0xf] %v1313
        %s1378 = sand.u32 %s146, 1
        %s1379 = scalar_lea.sflag [#allocation4], %s1378
        %s1380 = sand.u32 %s146, 1
        %s1381 = smul.addr %s1380, 128
        %s1382 = scalar_lea.vmem [#allocation7], %s1381
        %s1383 = sand.u32 %s172, 1
        %s1384 = scalar_lea.sflag [#allocation9], %s1383
        %s1385 = sand.u32 %s172, 1
        %s1386 = smul.addr %s1385, 128
        %s1387 = scalar_lea.vmem [#allocation8], %s1386
        // Predicated region
        $region49: #{tpu_custom_call.1} parent=39 // pred_check
          %p1388 = pneg %p156
        $region50: #{tpu_custom_call.1} parent=39 // pred_check_branch
          %1390 = sbr.rel (%p1388) target = $region52
        $region51: #{tpu_custom_call.1} parent=39 // pred_region
          %s1391 = smul.u32 32, %s28
          %s1393 = ssub.s32 2048, 2048
          %1394 = vsyncadd %s1379, %s1393
          %s1395 = smul.addr %s1391, 64
          %s1396 = scalar_lea.hbm %s5, %s1395
          %s1397 = sshll.u32 %s1382, 4
          %s1398 = int_to_ptr.vmem [resolvable:$true] %s1397
          %1403 = dma.vmem_to_hbm [thread:$0]  %s1398, 2048, %s1396, %s1379, 64, 64, 4
        $region52: #{tpu_custom_call.1} parent=39 // pred_fallthru
          _
        // Predicated region
        $region53: #{tpu_custom_call.1} parent=39 // pred_check
          %p1404 = pneg %p182
        $region54: #{tpu_custom_call.1} parent=39 // pred_check_branch
          %1406 = sbr.rel (%p1404) target = $region56
        $region55: #{tpu_custom_call.1} parent=39 // pred_region
          %s1407 = smul.u32 32, %s28
          %s1409 = ssub.s32 2048, 2048
          %1410 = vsyncadd %s1384, %s1409
          %s1411 = smul.addr %s1407, 64
          %s1412 = scalar_lea.hbm %s6, %s1411
          %s1413 = sshll.u32 %s1387, 4
          %s1414 = int_to_ptr.vmem [resolvable:$true] %s1413
          %1419 = dma.vmem_to_hbm [thread:$0]  %s1414, 2048, %s1412, %s1384, 64, 64, 4
        $region56: #{tpu_custom_call.1} parent=39 // pred_fallthru
          _
      $region40: #{tpu_custom_call.1} parent=5 // pred_fallthru
        _
      %p1420 = scmp.le.s32.totalorder 2, %s23
      // Predicated region
      $region57: #{tpu_custom_call.1} parent=5 // pred_check
        %p1421 = pneg %p1420
      $region58: #{tpu_custom_call.1} parent=5 // pred_check_branch
        %1423 = sbr.rel (%p1421) target = $region60
      $region59: #{tpu_custom_call.1} parent=5 // pred_region
        %s1424 = ssub.s32 %s23, 2
        // Predicated region
        $region61: #{tpu_custom_call.1} parent=59 // pred_check
          %p1425 = pneg %p162
        $region62: #{tpu_custom_call.1} parent=59 // pred_check_branch
          %1427 = sbr.rel (%p1425) target = $region64
        $region63: #{tpu_custom_call.1} parent=59 // pred_region
          %s1428 = sand.u32 %s147, 1
          %s1429 = scalar_lea.sflag [#allocation4], %s1428
          %s1430 = sand.u32 %s147, 1
          %s1431 = smul.addr %s1430, 128
          %s1432 = scalar_lea.vmem [#allocation7], %s1431
          %1433 = dma.done %s1429, 2048
        $region64: #{tpu_custom_call.1} parent=59 // pred_fallthru
          _
        // Predicated region
        $region65: #{tpu_custom_call.1} parent=59 // pred_check
          %p1434 = pneg %p188
        $region66: #{tpu_custom_call.1} parent=59 // pred_check_branch
          %1436 = sbr.rel (%p1434) target = $region68
        $region67: #{tpu_custom_call.1} parent=59 // pred_region
          %s1437 = sand.u32 %s173, 1
          %s1438 = scalar_lea.sflag [#allocation9], %s1437
          %s1439 = sand.u32 %s173, 1
          %s1440 = smul.addr %s1439, 128
          %s1441 = scalar_lea.vmem [#allocation8], %s1440
          %1442 = dma.done %s1438, 2048
        $region68: #{tpu_custom_call.1} parent=59 // pred_fallthru
          _
      $region60: #{tpu_custom_call.1} parent=5 // pred_fallthru
        _
    $region6: #{tpu_custom_call.1} parent=1 // loop_footer
      %s27 = sadd.s32 1, %s23
    $region7: #{tpu_custom_call.1} parent=1 // loop_footer_branch
      %22 = sbr.rel target = $region3
    $region8: #{tpu_custom_call.1} parent=1 // loop_exit
      _
    %1443 = vsyncpa [#allocation3], 1
    %s1444 = scalar_lea.sflag [#allocation3], 1
    %1445 = vsyncpa %s1444, 1
    %1446 = vsyncpa [#allocation6], 1
    %1447 = vsyncpa [#allocation4], 1
    %s1448 = scalar_lea.sflag [#allocation4], 1
    %1449 = vsyncpa %s1448, 1
    %1450 = vsyncpa [#allocation9], 1
    %s1451 = scalar_lea.sflag [#allocation9], 1
    %1452 = vsyncpa %s1451, 1

</llo_original>
